<compile_context>
chip_gen: v6e
topology: v6e:2x2x1
jax: 0.10.0
libtpu: 0.0.40
codegen_flags: <defaults>
</compile_context>

<pallas_src>
import math
import functools

import numpy as np
import jax
import jax.numpy as jnp
from jax.experimental import pallas as pl
from jax.experimental.pallas import tpu as pltpu

# ----------------- small synthetic BERT config (stands in for 512/768/12) -----------------
MAX_LEN = 16          # stands in for 512
HIDDEN = 128          # stands in for 768 (kept a multiple of 128: lane-dense)
N_HEADS = 2           # stands in for 12
HEAD_DIM = HIDDEN // N_HEADS
INTERMEDIATE = 256    # stands in for 3072
N_LAYERS = 2          # stands in for 12
VOCAB = 128
CLS_ID, SEP_ID, PAD_ID = 102, 103, 0


# ----------------- generation-aware VMEM budget -----------------
def _vmem_limit_bytes():
    """~75% of the part's physical VMEM (v5e/v6e: 128 MiB, v7x: 64 MiB)."""
    cap = 64 * 1024 * 1024
    try:
        info = pltpu.get_tpu_info()
        cap = int(getattr(info, "vmem_capacity_bytes", cap))
    except Exception:
        pass
    return max(32 * 1024 * 1024, (cap * 3) // 4)


VMEM_LIMIT = _vmem_limit_bytes()


def _compiler_params(dim_sem):
    return pltpu.CompilerParams(dimension_semantics=dim_sem,
                                vmem_limit_bytes=VMEM_LIMIT)


def _pick_tile(dim, target, align):
    """Largest align-multiple <= target that divides dim, else the full dim."""
    if dim <= target:
        return dim
    t = (target // align) * align
    while t >= align:
        if dim % t == 0:
            return t
        t -= align
    return dim


def _ln(x, g, b, eps=1e-12):
    """Row-wise LayerNorm in f32."""
    mu = jnp.mean(x, axis=-1, keepdims=True)
    var = jnp.mean(jnp.square(x - mu), axis=-1, keepdims=True)
    return (x - mu) * jax.lax.rsqrt(var + eps) * g + b


# --------------------------------------------------------------------------
# Embeddings: word-gather (bf16, XLA glue) + positional + type sum fused with
# LayerNorm in one per-chunk kernel.  No f32 [C*L, H] intermediate in HBM.
# --------------------------------------------------------------------------
def _emb_ln_kernel(word_ref, pos_ref, type_ref, g_ref, b_ref, o_ref):
    x = (word_ref[0].astype(jnp.float32)
         + pos_ref[...].astype(jnp.float32)
         + type_ref[...].astype(jnp.float32))
    o_ref[0] = _ln(x, g_ref[...], b_ref[...]).astype(o_ref.dtype)


def embed_layernorm(word_gather, pos_emb, type_row, g, b):
    C, L, H = word_gather.shape
    return pl.pallas_call(
        _emb_ln_kernel,
        out_shape=jax.ShapeDtypeStruct((C, L, H), jnp.bfloat16),
        grid=(C,),
        in_specs=[pl.BlockSpec((1, L, H), lambda c: (c, 0, 0)),
                  pl.BlockSpec((L, H), lambda c: (0, 0)),
                  pl.BlockSpec((1, H), lambda c: (0, 0)),
                  pl.BlockSpec((1, H), lambda c: (0, 0)),
                  pl.BlockSpec((1, H), lambda c: (0, 0))],
        out_specs=pl.BlockSpec((1, L, H), lambda c: (c, 0, 0)),
        compiler_params=_compiler_params(("parallel",)),
    )(word_gather, pos_emb, type_row, g.reshape(1, H), b.reshape(1, H))


# --------------------------------------------------------------------------
# Fully fused BERT encoder layer: one chunk per grid step; all layer weights
# are constant-index full blocks (resident in VMEM across the chunk loop).
# Per-chunk intermediates (qkv, scores, ctx, ff hidden) never touch HBM.
# --------------------------------------------------------------------------
def _encoder_layer_kernel(x_ref, bias_ref,
                          qkv_w_ref, qkv_b_ref,
                          ao_w_ref, ao_b_ref, ao_g_ref, ao_bt_ref,
                          ff1_w_ref, ff1_b_ref,
                          ff2_w_ref, ff2_b_ref, ff_g_ref, ff_bt_ref,
                          o_ref, *, n_heads, head_dim, hidden):
    x = x_ref[0]                                           # (L, H) bf16
    bias = bias_ref[0]                                     # (1, L) f32 additive mask

    # ---- fused QKV projection (softmax scale pre-folded into Q weights) ----
    qkv = jnp.dot(x, qkv_w_ref[...], preferred_element_type=jnp.float32)
    qkv = (qkv + qkv_b_ref[...]).astype(jnp.bfloat16)      # (L, 3H)

    # ---- multi-head self attention, all in VMEM ----
    # TODO(synk): at real N_HEADS=12 process heads in 128-lane pairs via a
    # fori_loop + VMEM scratch instead of a static unroll + concat.
    ctxs = []
    for h in range(n_heads):
        q = qkv[:, h * head_dim:(h + 1) * head_dim]                        # (L, Dh)
        k = qkv[:, hidden + h * head_dim:hidden + (h + 1) * head_dim]
        v = qkv[:, 2 * hidden + h * head_dim:2 * hidden + (h + 1) * head_dim]
        s = jax.lax.dot_general(q, k, (((1,), (1,)), ((), ())),
                                preferred_element_type=jnp.float32)        # (L, L)
        s = s + bias
        s = s - jnp.max(s, axis=-1, keepdims=True)
        p = jnp.exp(s)
        p = p * pl.reciprocal(jnp.sum(p, axis=-1, keepdims=True), approx=True)
        ctxs.append(jnp.dot(p.astype(jnp.bfloat16), v,
                            preferred_element_type=jnp.float32))           # (L, Dh)
    ctx = jnp.concatenate(ctxs, axis=-1).astype(jnp.bfloat16)              # (L, H)

    # ---- attention output dense + residual + LayerNorm ----
    y = jnp.dot(ctx, ao_w_ref[...], preferred_element_type=jnp.float32)
    y = y + ao_b_ref[...] + x.astype(jnp.float32)
    y = _ln(y, ao_g_ref[...], ao_bt_ref[...])
    x1 = y.astype(jnp.bfloat16)

    # ---- feed forward: FF1 + GELU, FF2 + residual + LayerNorm ----
    # TODO(synk): HF BERT uses the exact (erf) GELU; tanh approximation kept here.
    h1 = jnp.dot(x1, ff1_w_ref[...], preferred_element_type=jnp.float32)
    h1 = jax.nn.gelu(h1 + ff1_b_ref[...], approximate=True).astype(jnp.bfloat16)
    y2 = jnp.dot(h1, ff2_w_ref[...], preferred_element_type=jnp.float32)
    y2 = y2 + ff2_b_ref[...] + x1.astype(jnp.float32)
    y2 = _ln(y2, ff_g_ref[...], ff_bt_ref[...])
    o_ref[0] = y2.astype(o_ref.dtype)


def encoder_layer(x, mask_bias, lyr):
    C, L, H = x.shape
    H3 = 3 * H
    I = lyr["ff1_w"].shape[1]

    def r2(shape):
        # full-block, constant index -> weight stays resident across the chunk grid
        return pl.BlockSpec(shape, lambda c: (0, 0))

    in_specs = [
        pl.BlockSpec((1, L, H), lambda c: (c, 0, 0)),      # x (per chunk)
        pl.BlockSpec((1, 1, L), lambda c: (c, 0, 0)),      # additive mask bias
        r2((H, H3)), r2((1, H3)),                          # qkv
        r2((H, H)), r2((1, H)), r2((1, H)), r2((1, H)),    # attn out + LN
        r2((H, I)), r2((1, I)),                            # ff1
        r2((I, H)), r2((1, H)), r2((1, H)), r2((1, H)),    # ff2 + LN
    ]
    kern = functools.partial(_encoder_layer_kernel, n_heads=N_HEADS,
                             head_dim=HEAD_DIM, hidden=H)
    return pl.pallas_call(
        kern,
        out_shape=jax.ShapeDtypeStruct((C, L, H), jnp.bfloat16),
        grid=(C,),
        in_specs=in_specs,
        out_specs=pl.BlockSpec((1, L, H), lambda c: (c, 0, 0)),
        compiler_params=_compiler_params(("parallel",)),
    )(x, mask_bias,
      lyr["qkv_w"], lyr["qkv_b"].reshape(1, H3),
      lyr["ao_w"], lyr["ao_b"].reshape(1, H),
      lyr["ao_ln_g"].reshape(1, H), lyr["ao_ln_b"].reshape(1, H),
      lyr["ff1_w"], lyr["ff1_b"].reshape(1, I),
      lyr["ff2_w"], lyr["ff2_b"].reshape(1, H),
      lyr["ff_ln_g"].reshape(1, H), lyr["ff_ln_b"].reshape(1, H))


# --------------------------------------------------------------------------
# Full-K dense (used for the pooler Linear+Tanh).  For BERT-base-like K
# (<= 3072) the whole reduction dim fits VMEM: no K grid axis, no accumulator
# scratch, no @pl.when.  Grid = (N tiles, M tiles) with M innermost so the
# (K, tn) weight tile stays resident while activation tiles stream.
# --------------------------------------------------------------------------
def _dense_kernel(x_ref, w_ref, b_ref, o_ref, *, activation):
    y = jnp.dot(x_ref[...], w_ref[...], preferred_element_type=jnp.float32)
    y = y + b_ref[...].astype(jnp.float32)
    if activation == "tanh":
        y = jnp.tanh(y)
    elif activation == "gelu":
        y = jax.nn.gelu(y, approximate=True)
    o_ref[...] = y.astype(o_ref.dtype)


def dense(x, w, b, *, activation=None, out_dtype=jnp.bfloat16, tm=512, tn=512):
    M, K = x.shape
    N = w.shape[1]
    tm = _pick_tile(M, tm, 8)
    tn = _pick_tile(N, tn, 128)
    kern = functools.partial(_dense_kernel, activation=activation)
    return pl.pallas_call(
        kern,
        out_shape=jax.ShapeDtypeStruct((M, N), out_dtype),
        grid=(N // tn, M // tm),
        in_specs=[pl.BlockSpec((tm, K), lambda j, i: (i, 0)),
                  pl.BlockSpec((K, tn), lambda j, i: (0, j)),
                  pl.BlockSpec((1, tn), lambda j, i: (0, j))],
        out_specs=pl.BlockSpec((tm, tn), lambda j, i: (i, j)),
        compiler_params=_compiler_params(("parallel", "parallel")),
    )(x, w, b.reshape(1, N))


# -------------------------- per-text mean over chunks --------------------------
def _segmean_kernel(base_ref, count_ref, pooled_ref, o_ref):
    T = o_ref.shape[0]
    C = pooled_ref.shape[0]
    base = base_ref[...]                                    # (T, 1) int32
    count = count_ref[...]                                  # (T, 1) int32
    cols = jax.lax.broadcasted_iota(jnp.int32, (T, C), 1)
    sel = jnp.logical_and(cols >= base, cols < base + count).astype(jnp.float32)
    inv = 1.0 / jnp.maximum(count, 1).astype(jnp.float32)   # guard count == 0
    o_ref[...] = jnp.dot(sel * inv, pooled_ref[...].astype(jnp.float32),
                         preferred_element_type=jnp.float32)


def segment_mean(pooled, base, count, num_texts):
    C, H = pooled.shape
    T = num_texts
    return pl.pallas_call(
        _segmean_kernel,
        out_shape=jax.ShapeDtypeStruct((T, H), jnp.float32),
        grid=(1,),
        in_specs=[pl.BlockSpec((T, 1), lambda i: (0, 0)),
                  pl.BlockSpec((T, 1), lambda i: (0, 0)),
                  pl.BlockSpec((C, H), lambda i: (0, 0))],
        out_specs=pl.BlockSpec((T, H), lambda i: (0, 0)),
        compiler_params=_compiler_params(("arbitrary",)),
    )(base.reshape(T, 1), count.reshape(T, 1), pooled)


# ------------------------- synthetic BERT parameters -------------------------
def init_params(key):
    def nrm(k, shape, scale=0.02):
        return scale * jax.random.normal(k, shape, dtype=jnp.float32)

    attn_scale = 1.0 / math.sqrt(HEAD_DIM)
    keys = iter(jax.random.split(key, 16 + N_LAYERS * 16))
    p = {
        "word_emb": nrm(next(keys), (VOCAB, HIDDEN)).astype(jnp.bfloat16),
        "pos_emb": nrm(next(keys), (MAX_LEN, HIDDEN)),
        "type_emb": nrm(next(keys), (2, HIDDEN)),
        "emb_ln_g": jnp.ones((HIDDEN,), jnp.float32),
        "emb_ln_b": jnp.zeros((HIDDEN,), jnp.float32),
        "layers": [],
        # the module's own pooler: nn.Linear(H, H) + Tanh
        "pooler_w": nrm(next(keys), (HIDDEN, HIDDEN)).astype(jnp.bfloat16),
        "pooler_b": jnp.zeros((HIDDEN,), jnp.float32),
    }
    for _ in range(N_LAYERS):
        q_w = nrm(next(keys), (HIDDEN, HIDDEN))
        k_w = nrm(next(keys), (HIDDEN, HIDDEN))
        v_w = nrm(next(keys), (HIDDEN, HIDDEN))
        q_b = jnp.zeros((HIDDEN,), jnp.float32)
        lyr = {
            # Q/K/V fused into one [H, 3H] weight; 1/sqrt(head_dim) folded into
            # the Q columns (and Q bias) so the kernel never scales the scores.
            "qkv_w": jnp.concatenate([q_w * attn_scale, k_w, v_w],
                                     axis=1).astype(jnp.bfloat16),
            "qkv_b": jnp.concatenate([q_b * attn_scale,
                                      jnp.zeros((HIDDEN,), jnp.float32),
                                      jnp.zeros((HIDDEN,), jnp.float32)]),
            "ao_w": nrm(next(keys), (HIDDEN, HIDDEN)).astype(jnp.bfloat16),
            "ao_b": jnp.zeros((HIDDEN,), jnp.float32),
            "ao_ln_g": jnp.ones((HIDDEN,), jnp.float32),
            "ao_ln_b": jnp.zeros((HIDDEN,), jnp.float32),
            "ff1_w": nrm(next(keys), (HIDDEN, INTERMEDIATE)).astype(jnp.bfloat16),
            "ff1_b": jnp.zeros((INTERMEDIATE,), jnp.float32),
            "ff2_w": nrm(next(keys), (INTERMEDIATE, HIDDEN)).astype(jnp.bfloat16),
            "ff2_b": jnp.zeros((HIDDEN,), jnp.float32),
            "ff_ln_g": jnp.ones((HIDDEN,), jnp.float32),
            "ff_ln_b": jnp.zeros((HIDDEN,), jnp.float32),
        }
        p["layers"].append(lyr)
    return p


def bert_encoder(params, input_ids, attention_mask):
    """input_ids: [C, L] int32, attention_mask: [C, L] float32 -> [C, L, H] bf16."""
    C, L = input_ids.shape
    # word-embedding gather = XLA glue (bf16 table); sum + LN fused in Pallas
    word = params["word_emb"][input_ids]                                # [C, L, H] bf16
    x = embed_layernorm(word, params["pos_emb"], params["type_emb"][0:1],
                        params["emb_ln_g"], params["emb_ln_b"])         # [C, L, H] bf16

    # additive mask bias hoisted once per forward (not per head / per layer)
    mask_bias = ((1.0 - attention_mask.astype(jnp.float32)) * -1e9).reshape(C, 1, L)

    for lyr in params["layers"]:
        x = encoder_layer(x, mask_bias, lyr)                            # fused layer
    return x


def bert_parts_forward(params, input_ids, attention_mask, chunk_base, chunk_count):
    """Mirrors BertParts.forward after tokenization/chunking."""
    last_hidden = bert_encoder(params, input_ids, attention_mask)       # [C, L, H]
    cls = last_hidden[:, 0, :]                                          # [C, H]
    pooled = dense(cls, params["pooler_w"], params["pooler_b"],
                   activation="tanh", out_dtype=jnp.float32)            # Linear+Tanh fused
    return segment_mean(pooled, chunk_base, chunk_count, chunk_base.shape[0])


# ---------------------------- chunking (host glue) ----------------------------
# TODO(synk): the real HuggingFace WordPiece tokenizer has no Pallas equivalent;
# token id lists are synthesized deterministically instead.
def chunk_token_lists(tokens_list, max_len):
    divided, masks, num_sublists = [], [], []
    body = max_len - 2
    for tokens in tokens_list:
        n = 0
        for x in range(0, len(tokens), body):
            chunk = [CLS_ID] + tokens[x:x + body] + [SEP_ID]
            mask = [1] * len(chunk) + [0] * (max_len - len(chunk))
            chunk = chunk + [PAD_ID] * (max_len - len(chunk))
            divided.append(chunk)
            masks.append(mask)
            n += 1
        num_sublists.append(n)
    base = np.concatenate([[0], np.cumsum(num_sublists)[:-1]]).astype(np.int32)
    return (np.array(divided, np.int32), np.array(masks, np.float32),
            base, np.array(num_sublists, np.int32))


# ------------------------------------ main ------------------------------------
if __name__ == "__main__":
    key = jax.random.PRNGKey(0)
    kp, kt = jax.random.split(key)
    params = init_params(kp)

    # Synthetic "tokenized texts" (already without original CLS/SEP, as the
    # PyTorch code pops them).  Lengths chosen to exercise multi-chunk texts.
    lengths = [20, 10, 30]
    tok_keys = jax.random.split(kt, len(lengths))
    tokens_list = [
        [int(t) for t in np.asarray(
            jax.random.randint(tok_keys[i], (lengths[i],), 1, VOCAB - 1))]
        for i in range(len(lengths))
    ]

    ids_np, mask_np, base_np, count_np = chunk_token_lists(tokens_list, MAX_LEN)
    input_ids = jnp.asarray(ids_np)          # [C, L] int32   (C = 6, L = 16)
    attn_mask = jnp.asarray(mask_np)         # [C, L] float32
    chunk_base = jnp.asarray(base_np)        # [T] int32
    chunk_count = jnp.asarray(count_np)      # [T] int32

    fwd = jax.jit(bert_parts_forward)
    out = jax.block_until_ready(fwd(params, input_ids, attn_mask,
                                    chunk_base, chunk_count))

    assert out.shape == (len(lengths), HIDDEN), out.shape
    assert bool(jnp.all(jnp.isfinite(out)))
    print("KERNEL_OK")
</pallas_src>

<mosaic_0001>
module attributes {stable_mosaic.version = 11 : i64} {
  func.func @_segmean_kernel(%arg0: i32, %arg1: memref<3x1xi32, #tpu.memory_space<vmem>>, %arg2: memref<3x1xi32, #tpu.memory_space<vmem>>, %arg3: memref<6x128xf32, #tpu.memory_space<vmem>>, %arg4: memref<3x128xf32, #tpu.memory_space<vmem>>) attributes {dimension_semantics = [#tpu.dimension_semantics<arbitrary>], iteration_bounds = array<i64: 1>, scalar_prefetch = 0 : i64, scratch_operands = 0 : i64, tpu.core_type = #tpu.core_type<tc>, window_params = [{pipeline_mode = #tpu.pipeline_mode<synchronous>, transform_indices = @transform_0, window_bounds = array<i64: 3, 1>}, {pipeline_mode = #tpu.pipeline_mode<synchronous>, transform_indices = @transform_1, window_bounds = array<i64: 3, 1>}, {pipeline_mode = #tpu.pipeline_mode<synchronous>, transform_indices = @transform_2, window_bounds = array<i64: 6, 128>}, {pipeline_mode = #tpu.pipeline_mode<synchronous>, transform_indices = @transform_3, window_bounds = array<i64: 3, 128>}]} {
    %c0 = arith.constant 0 : index
    %c0_0 = arith.constant 0 : index
    %0 = vector.load %arg1[%c0, %c0_0] : memref<3x1xi32, #tpu.memory_space<vmem>>, vector<3x1xi32>
    %c0_1 = arith.constant 0 : index
    %c0_2 = arith.constant 0 : index
    %1 = vector.load %arg2[%c0_1, %c0_2] : memref<3x1xi32, #tpu.memory_space<vmem>>, vector<3x1xi32>
    %2 = tpu.iota {dimensions = array<i32: 1>} : vector<3x6xi32>
    %3 = vector.broadcast %0 : vector<3x1xi32> to vector<3x6xi32>
    %4 = arith.cmpi sge, %2, %3 : vector<3x6xi32>
    %5 = arith.addi %0, %1 : vector<3x1xi32>
    %6 = vector.broadcast %5 : vector<3x1xi32> to vector<3x6xi32>
    %7 = arith.cmpi slt, %2, %6 : vector<3x6xi32>
    %8 = arith.andi %4, %7 : vector<3x6xi1>
    %9 = arith.extui %8 : vector<3x6xi1> to vector<3x6xi32>
    %10 = arith.sitofp %9 : vector<3x6xi32> to vector<3x6xf32>
    %c1_i32 = arith.constant 1 : i32
    %11 = vector.broadcast %c1_i32 : i32 to vector<3x1xi32>
    %12 = arith.maxsi %1, %11 : vector<3x1xi32>
    %13 = arith.sitofp %12 : vector<3x1xi32> to vector<3x1xf32>
    %cst = arith.constant 1.000000e+00 : f32
    %14 = vector.broadcast %cst : f32 to vector<3x1xf32>
    %15 = arith.divf %14, %13 : vector<3x1xf32>
    %16 = vector.broadcast %15 : vector<3x1xf32> to vector<3x6xf32>
    %17 = arith.mulf %10, %16 : vector<3x6xf32>
    %c0_3 = arith.constant 0 : index
    %c0_4 = arith.constant 0 : index
    %18 = vector.load %arg3[%c0_3, %c0_4] : memref<6x128xf32, #tpu.memory_space<vmem>>, vector<6x128xf32>
    %cst_5 = arith.constant dense<0.000000e+00> : vector<3x128xf32>
    %19 = tpu.matmul %17, %18, %cst_5 {dimension_numbers = #tpu.dot_dimension_numbers<[1], [0], [0], [1], [0, 0, 1, 1], [], []>} : vector<3x6xf32>, vector<6x128xf32>, vector<3x128xf32> -> vector<3x128xf32>
    %c0_6 = arith.constant 0 : index
    %c0_7 = arith.constant 0 : index
    %20 = vector.load %arg4[%c0_6, %c0_7] : memref<3x128xf32, #tpu.memory_space<vmem>>, vector<3x128xf32>
    tpu.vector_store %arg4[%c0_6, %c0_7], %19 {strides = array<i32>} : memref<3x128xf32, #tpu.memory_space<vmem>>, vector<3x128xf32>,
    return
  }
  func.func @transform_0(%arg0: i32) -> (i32, i32) {
    %c0_i32 = arith.constant 0 : i32
    %c0_i32_0 = arith.constant 0 : i32
    %c0_i32_1 = arith.constant 0 : i32
    return %c0_i32, %c0_i32_0 : i32, i32
  }
  func.func @transform_1(%arg0: i32) -> (i32, i32) {
    %c0_i32 = arith.constant 0 : i32
    %c0_i32_0 = arith.constant 0 : i32
    %c0_i32_1 = arith.constant 0 : i32
    return %c0_i32, %c0_i32_0 : i32, i32
  }
  func.func @transform_2(%arg0: i32) -> (i32, i32) {
    %c0_i32 = arith.constant 0 : i32
    %c0_i32_0 = arith.constant 0 : i32
    %c0_i32_1 = arith.constant 0 : i32
    return %c0_i32, %c0_i32_0 : i32, i32
  }
  func.func @transform_3(%arg0: i32) -> (i32, i32) {
    %c0_i32 = arith.constant 0 : i32
    %c0_i32_0 = arith.constant 0 : i32
    %c0_i32_1 = arith.constant 0 : i32
    return %c0_i32, %c0_i32_0 : i32, i32
  }
}

module attributes {stable_mosaic.version = 11 : i64} {
  func.func @_emb_ln_kernel(%arg0: i32, %arg1: memref<1x16x128xbf16, #tpu.memory_space<vmem>>, %arg2: memref<16x128xf32, #tpu.memory_space<vmem>>, %arg3: memref<1x128xf32, #tpu.memory_space<vmem>>, %arg4: memref<1x128xf32, #tpu.memory_space<vmem>>, %arg5: memref<1x128xf32, #tpu.memory_space<vmem>>, %arg6: memref<1x16x128xbf16, #tpu.memory_space<vmem>>) attributes {dimension_semantics = [#tpu.dimension_semantics<parallel>], iteration_bounds = array<i64: 6>, scalar_prefetch = 0 : i64, scratch_operands = 0 : i64, tpu.core_type = #tpu.core_type<tc>, window_params = [{transform_indices = @transform_0, window_bounds = array<i64: 1, 16, 128>}, {pipeline_mode = #tpu.pipeline_mode<synchronous>, transform_indices = @transform_1, window_bounds = array<i64: 16, 128>}, {pipeline_mode = #tpu.pipeline_mode<synchronous>, transform_indices = @transform_2, window_bounds = array<i64: 1, 128>}, {pipeline_mode = #tpu.pipeline_mode<synchronous>, transform_indices = @transform_3, window_bounds = array<i64: 1, 128>}, {pipeline_mode = #tpu.pipeline_mode<synchronous>, transform_indices = @transform_4, window_bounds = array<i64: 1, 128>}, {transform_indices = @transform_5, window_bounds = array<i64: 1, 16, 128>}]} {
    %c0 = arith.constant 0 : index
    %c0_0 = arith.constant 0 : index
    %c0_1 = arith.constant 0 : index
    %0 = vector.load %arg1[%c0, %c0_0, %c0_1] : memref<1x16x128xbf16, #tpu.memory_space<vmem>>, vector<1x16x128xbf16>
    %1 = vector.shape_cast %0 : vector<1x16x128xbf16> to vector<16x128xbf16>
    %2 = arith.extf %1 : vector<16x128xbf16> to vector<16x128xf32>
    %c0_2 = arith.constant 0 : index
    %c0_3 = arith.constant 0 : index
    %3 = vector.load %arg2[%c0_2, %c0_3] : memref<16x128xf32, #tpu.memory_space<vmem>>, vector<16x128xf32>
    %4 = arith.addf %2, %3 : vector<16x128xf32>
    %c0_4 = arith.constant 0 : index
    %c0_5 = arith.constant 0 : index
    %5 = vector.load %arg3[%c0_4, %c0_5] : memref<1x128xf32, #tpu.memory_space<vmem>>, vector<1x128xf32>
    %6 = vector.broadcast %5 : vector<1x128xf32> to vector<16x128xf32>
    %7 = arith.addf %4, %6 : vector<16x128xf32>
    %c0_6 = arith.constant 0 : index
    %c0_7 = arith.constant 0 : index
    %8 = vector.load %arg4[%c0_6, %c0_7] : memref<1x128xf32, #tpu.memory_space<vmem>>, vector<1x128xf32>
    %c0_8 = arith.constant 0 : index
    %c0_9 = arith.constant 0 : index
    %9 = vector.load %arg5[%c0_8, %c0_9] : memref<1x128xf32, #tpu.memory_space<vmem>>, vector<1x128xf32>
    %cst = arith.constant dense<0.000000e+00> : vector<16xf32>
    %10 = vector.multi_reduction <add>, %7, %cst [1] : vector<16x128xf32> to vector<16xf32>
    %11 = vector.shape_cast %10 : vector<16xf32> to vector<16x1xf32>
    %cst_10 = arith.constant 1.280000e+02 : f32
    %12 = vector.broadcast %cst_10 : f32 to vector<16x1xf32>
    %13 = arith.divf %11, %12 : vector<16x1xf32>
    %14 = vector.broadcast %13 : vector<16x1xf32> to vector<16x128xf32>
    %15 = arith.subf %7, %14 : vector<16x128xf32>
    %16 = arith.mulf %15, %15 : vector<16x128xf32>
    %cst_11 = arith.constant dense<0.000000e+00> : vector<16xf32>
    %17 = vector.multi_reduction <add>, %16, %cst_11 [1] : vector<16x128xf32> to vector<16xf32>
    %18 = vector.shape_cast %17 : vector<16xf32> to vector<16x1xf32>
    %cst_12 = arith.constant 1.280000e+02 : f32
    %19 = vector.broadcast %cst_12 : f32 to vector<16x1xf32>
    %20 = arith.divf %18, %19 : vector<16x1xf32>
    %21 = vector.broadcast %13 : vector<16x1xf32> to vector<16x128xf32>
    %22 = arith.subf %7, %21 : vector<16x128xf32>
    %cst_13 = arith.constant 9.99999996E-13 : f32
    %23 = vector.broadcast %cst_13 : f32 to vector<16x1xf32>
    %24 = arith.addf %20, %23 : vector<16x1xf32>
    %25 = math.rsqrt %24 : vector<16x1xf32>
    %26 = vector.broadcast %25 : vector<16x1xf32> to vector<16x128xf32>
    %27 = arith.mulf %22, %26 : vector<16x128xf32>
    %28 = vector.broadcast %8 : vector<1x128xf32> to vector<16x128xf32>
    %29 = arith.mulf %27, %28 : vector<16x128xf32>
    %30 = vector.broadcast %9 : vector<1x128xf32> to vector<16x128xf32>
    %31 = arith.addf %29, %30 : vector<16x128xf32>
    %32 = arith.truncf %31 : vector<16x128xf32> to vector<16x128xbf16>
    %c0_14 = arith.constant 0 : index
    %c0_15 = arith.constant 0 : index
    %c0_16 = arith.constant 0 : index
    %33 = vector.load %arg6[%c0_14, %c0_15, %c0_16] : memref<1x16x128xbf16, #tpu.memory_space<vmem>>, vector<1x16x128xbf16>
    %34 = vector.shape_cast %33 : vector<1x16x128xbf16> to vector<16x128xbf16>
    %35 = vector.shape_cast %32 : vector<16x128xbf16> to vector<1x16x128xbf16>
    tpu.vector_store %arg6[%c0_14, %c0_15, %c0_16], %35 {strides = array<i32>} : memref<1x16x128xbf16, #tpu.memory_space<vmem>>, vector<1x16x128xbf16>,
    return
  }
  func.func @transform_0(%arg0: i32) -> (i32, i32, i32) {
    %c0_i32 = arith.constant 0 : i32
    %c0_i32_0 = arith.constant 0 : i32
    %c0_i32_1 = arith.constant 0 : i32
    return %arg0, %c0_i32, %c0_i32_0 : i32, i32, i32
  }
  func.func @transform_1(%arg0: i32) -> (i32, i32) {
    %c0_i32 = arith.constant 0 : i32
    %c0_i32_0 = arith.constant 0 : i32
    %c0_i32_1 = arith.constant 0 : i32
    return %c0_i32, %c0_i32_0 : i32, i32
  }
  func.func @transform_2(%arg0: i32) -> (i32, i32) {
    %c0_i32 = arith.constant 0 : i32
    %c0_i32_0 = arith.constant 0 : i32
    %c0_i32_1 = arith.constant 0 : i32
    return %c0_i32, %c0_i32_0 : i32, i32
  }
  func.func @transform_3(%arg0: i32) -> (i32, i32) {
    %c0_i32 = arith.constant 0 : i32
    %c0_i32_0 = arith.constant 0 : i32
    %c0_i32_1 = arith.constant 0 : i32
    return %c0_i32, %c0_i32_0 : i32, i32
  }
  func.func @transform_4(%arg0: i32) -> (i32, i32) {
    %c0_i32 = arith.constant 0 : i32
    %c0_i32_0 = arith.constant 0 : i32
    %c0_i32_1 = arith.constant 0 : i32
    return %c0_i32, %c0_i32_0 : i32, i32
  }
  func.func @transform_5(%arg0: i32) -> (i32, i32, i32) {
    %c0_i32 = arith.constant 0 : i32
    %c0_i32_0 = arith.constant 0 : i32
    %c0_i32_1 = arith.constant 0 : i32
    return %arg0, %c0_i32, %c0_i32_0 : i32, i32, i32
  }
}

module attributes {stable_mosaic.version = 11 : i64} {
  func.func @_encoder_layer_kernel(%arg0: i32, %arg1: memref<1x16x128xbf16, #tpu.memory_space<vmem>>, %arg2: memref<1x1x16xf32, #tpu.memory_space<vmem>>, %arg3: memref<128x384xbf16, #tpu.memory_space<vmem>>, %arg4: memref<1x384xf32, #tpu.memory_space<vmem>>, %arg5: memref<128x128xbf16, #tpu.memory_space<vmem>>, %arg6: memref<1x128xf32, #tpu.memory_space<vmem>>, %arg7: memref<1x128xf32, #tpu.memory_space<vmem>>, %arg8: memref<1x128xf32, #tpu.memory_space<vmem>>, %arg9: memref<128x256xbf16, #tpu.memory_space<vmem>>, %arg10: memref<1x256xf32, #tpu.memory_space<vmem>>, %arg11: memref<256x128xbf16, #tpu.memory_space<vmem>>, %arg12: memref<1x128xf32, #tpu.memory_space<vmem>>, %arg13: memref<1x128xf32, #tpu.memory_space<vmem>>, %arg14: memref<1x128xf32, #tpu.memory_space<vmem>>, %arg15: memref<1x16x128xbf16, #tpu.memory_space<vmem>>) attributes {dimension_semantics = [#tpu.dimension_semantics<parallel>], iteration_bounds = array<i64: 6>, scalar_prefetch = 0 : i64, scratch_operands = 0 : i64, tpu.core_type = #tpu.core_type<tc>, window_params = [{transform_indices = @transform_0, window_bounds = array<i64: 1, 16, 128>}, {transform_indices = @transform_1, window_bounds = array<i64: 1, 1, 16>}, {pipeline_mode = #tpu.pipeline_mode<synchronous>, transform_indices = @transform_2, window_bounds = array<i64: 128, 384>}, {pipeline_mode = #tpu.pipeline_mode<synchronous>, transform_indices = @transform_3, window_bounds = array<i64: 1, 384>}, {pipeline_mode = #tpu.pipeline_mode<synchronous>, transform_indices = @transform_4, window_bounds = array<i64: 128, 128>}, {pipeline_mode = #tpu.pipeline_mode<synchronous>, transform_indices = @transform_5, window_bounds = array<i64: 1, 128>}, {pipeline_mode = #tpu.pipeline_mode<synchronous>, transform_indices = @transform_6, window_bounds = array<i64: 1, 128>}, {pipeline_mode = #tpu.pipeline_mode<synchronous>, transform_indices = @transform_7, window_bounds = array<i64: 1, 128>}, {pipeline_mode = #tpu.pipeline_mode<synchronous>, transform_indices = @transform_8, window_bounds = array<i64: 128, 256>}, {pipeline_mode = #tpu.pipeline_mode<synchronous>, transform_indices = @transform_9, window_bounds = array<i64: 1, 256>}, {pipeline_mode = #tpu.pipeline_mode<synchronous>, transform_indices = @transform_10, window_bounds = array<i64: 256, 128>}, {pipeline_mode = #tpu.pipeline_mode<synchronous>, transform_indices = @transform_11, window_bounds = array<i64: 1, 128>}, {pipeline_mode = #tpu.pipeline_mode<synchronous>, transform_indices = @transform_12, window_bounds = array<i64: 1, 128>}, {pipeline_mode = #tpu.pipeline_mode<synchronous>, transform_indices = @transform_13, window_bounds = array<i64: 1, 128>}, {transform_indices = @transform_14, window_bounds = array<i64: 1, 16, 128>}]} {
    %c0 = arith.constant 0 : index
    %c0_0 = arith.constant 0 : index
    %c0_1 = arith.constant 0 : index
    %0 = vector.load %arg1[%c0, %c0_0, %c0_1] : memref<1x16x128xbf16, #tpu.memory_space<vmem>>, vector<1x16x128xbf16>
    %1 = vector.shape_cast %0 : vector<1x16x128xbf16> to vector<16x128xbf16>
    %c0_2 = arith.constant 0 : index
    %c0_3 = arith.constant 0 : index
    %c0_4 = arith.constant 0 : index
    %2 = vector.load %arg2[%c0_2, %c0_3, %c0_4] : memref<1x1x16xf32, #tpu.memory_space<vmem>>, vector<1x1x16xf32>
    %3 = vector.shape_cast %2 : vector<1x1x16xf32> to vector<1x16xf32>
    %c0_5 = arith.constant 0 : index
    %c0_6 = arith.constant 0 : index
    %4 = vector.load %arg3[%c0_5, %c0_6] : memref<128x384xbf16, #tpu.memory_space<vmem>>, vector<128x384xbf16>
    %cst = arith.constant dense<0.000000e+00> : vector<16x384xf32>
    %5 = tpu.matmul %1, %4, %cst {dimension_numbers = #tpu.dot_dimension_numbers<[1], [0], [0], [1], [0, 0, 1, 1], [], []>} : vector<16x128xbf16>, vector<128x384xbf16>, vector<16x384xf32> -> vector<16x384xf32>
    %c0_7 = arith.constant 0 : index
    %c0_8 = arith.constant 0 : index
    %6 = vector.load %arg4[%c0_7, %c0_8] : memref<1x384xf32, #tpu.memory_space<vmem>>, vector<1x384xf32>
    %7 = vector.broadcast %6 : vector<1x384xf32> to vector<16x384xf32>
    %8 = arith.addf %5, %7 : vector<16x384xf32>
    %9 = arith.truncf %8 : vector<16x384xf32> to vector<16x384xbf16>
    %10 = vector.extract_strided_slice %9 {offsets = [0, 0], sizes = [16, 64], strides = [1, 1]} : vector<16x384xbf16> to vector<16x64xbf16>
    %11 = vector.extract_strided_slice %9 {offsets = [0, 128], sizes = [16, 64], strides = [1, 1]} : vector<16x384xbf16> to vector<16x64xbf16>
    %12 = vector.extract_strided_slice %9 {offsets = [0, 256], sizes = [16, 64], strides = [1, 1]} : vector<16x384xbf16> to vector<16x64xbf16>
    %cst_9 = arith.constant dense<0.000000e+00> : vector<16x16xf32>
    %13 = tpu.matmul %10, %11, %cst_9 {dimension_numbers = #tpu.dot_dimension_numbers<[1], [1], [0], [0], [0, 0, 1, 0], [], []>} : vector<16x64xbf16>, vector<16x64xbf16>, vector<16x16xf32> -> vector<16x16xf32>
    %14 = vector.broadcast %3 : vector<1x16xf32> to vector<16x16xf32>
    %15 = arith.addf %13, %14 : vector<16x16xf32>
    %cst_10 = arith.constant dense<0xFF800000> : vector<16xf32>
    %16 = vector.multi_reduction <maximumf>, %15, %cst_10 [1] : vector<16x16xf32> to vector<16xf32>
    %17 = vector.shape_cast %16 : vector<16xf32> to vector<16x1xf32>
    %18 = vector.broadcast %17 : vector<16x1xf32> to vector<16x16xf32>
    %19 = arith.subf %15, %18 : vector<16x16xf32>
    %20 = math.exp %19 : vector<16x16xf32>
    %cst_11 = arith.constant dense<0.000000e+00> : vector<16xf32>
    %21 = vector.multi_reduction <add>, %20, %cst_11 [1] : vector<16x16xf32> to vector<16xf32>
    %22 = vector.shape_cast %21 : vector<16xf32> to vector<16x1xf32>
    %23 = tpu.reciprocal %22 {approx = true} : vector<16x1xf32> -> vector<16x1xf32>
    %24 = vector.broadcast %23 : vector<16x1xf32> to vector<16x16xf32>
    %25 = arith.mulf %20, %24 : vector<16x16xf32>
    %26 = arith.truncf %25 : vector<16x16xf32> to vector<16x16xbf16>
    %cst_12 = arith.constant dense<0.000000e+00> : vector<16x64xf32>
    %27 = tpu.matmul %26, %12, %cst_12 {dimension_numbers = #tpu.dot_dimension_numbers<[1], [0], [0], [1], [0, 0, 1, 1], [], []>} : vector<16x16xbf16>, vector<16x64xbf16>, vector<16x64xf32> -> vector<16x64xf32>
    %28 = vector.extract_strided_slice %9 {offsets = [0, 64], sizes = [16, 64], strides = [1, 1]} : vector<16x384xbf16> to vector<16x64xbf16>
    %29 = vector.extract_strided_slice %9 {offsets = [0, 192], sizes = [16, 64], strides = [1, 1]} : vector<16x384xbf16> to vector<16x64xbf16>
    %30 = vector.extract_strided_slice %9 {offsets = [0, 320], sizes = [16, 64], strides = [1, 1]} : vector<16x384xbf16> to vector<16x64xbf16>
    %cst_13 = arith.constant dense<0.000000e+00> : vector<16x16xf32>
    %31 = tpu.matmul %28, %29, %cst_13 {dimension_numbers = #tpu.dot_dimension_numbers<[1], [1], [0], [0], [0, 0, 1, 0], [], []>} : vector<16x64xbf16>, vector<16x64xbf16>, vector<16x16xf32> -> vector<16x16xf32>
    %32 = vector.broadcast %3 : vector<1x16xf32> to vector<16x16xf32>
    %33 = arith.addf %31, %32 : vector<16x16xf32>
    %cst_14 = arith.constant dense<0xFF800000> : vector<16xf32>
    %34 = vector.multi_reduction <maximumf>, %33, %cst_14 [1] : vector<16x16xf32> to vector<16xf32>
    %35 = vector.shape_cast %34 : vector<16xf32> to vector<16x1xf32>
    %36 = vector.broadcast %35 : vector<16x1xf32> to vector<16x16xf32>
    %37 = arith.subf %33, %36 : vector<16x16xf32>
    %38 = math.exp %37 : vector<16x16xf32>
    %cst_15 = arith.constant dense<0.000000e+00> : vector<16xf32>
    %39 = vector.multi_reduction <add>, %38, %cst_15 [1] : vector<16x16xf32> to vector<16xf32>
    %40 = vector.shape_cast %39 : vector<16xf32> to vector<16x1xf32>
    %41 = tpu.reciprocal %40 {approx = true} : vector<16x1xf32> -> vector<16x1xf32>
    %42 = vector.broadcast %41 : vector<16x1xf32> to vector<16x16xf32>
    %43 = arith.mulf %38, %42 : vector<16x16xf32>
    %44 = arith.truncf %43 : vector<16x16xf32> to vector<16x16xbf16>
    %cst_16 = arith.constant dense<0.000000e+00> : vector<16x64xf32>
    %45 = tpu.matmul %44, %30, %cst_16 {dimension_numbers = #tpu.dot_dimension_numbers<[1], [0], [0], [1], [0, 0, 1, 1], [], []>} : vector<16x16xbf16>, vector<16x64xbf16>, vector<16x64xf32> -> vector<16x64xf32>
    %46 = tpu.concatenate %27, %45 in 1 : vector<16x64xf32>, vector<16x64xf32> -> vector<16x128xf32>
    %47 = arith.truncf %46 : vector<16x128xf32> to vector<16x128xbf16>
    %c0_17 = arith.constant 0 : index
    %c0_18 = arith.constant 0 : index
    %48 = vector.load %arg5[%c0_17, %c0_18] : memref<128x128xbf16, #tpu.memory_space<vmem>>, vector<128x128xbf16>
    %cst_19 = arith.constant dense<0.000000e+00> : vector<16x128xf32>
    %49 = tpu.matmul %47, %48, %cst_19 {dimension_numbers = #tpu.dot_dimension_numbers<[1], [0], [0], [1], [0, 0, 1, 1], [], []>} : vector<16x128xbf16>, vector<128x128xbf16>, vector<16x128xf32> -> vector<16x128xf32>
    %c0_20 = arith.constant 0 : index
    %c0_21 = arith.constant 0 : index
    %50 = vector.load %arg6[%c0_20, %c0_21] : memref<1x128xf32, #tpu.memory_space<vmem>>, vector<1x128xf32>
    %51 = vector.broadcast %50 : vector<1x128xf32> to vector<16x128xf32>
    %52 = arith.addf %49, %51 : vector<16x128xf32>
    %53 = arith.extf %1 : vector<16x128xbf16> to vector<16x128xf32>
    %54 = arith.addf %52, %53 : vector<16x128xf32>
    %c0_22 = arith.constant 0 : index
    %c0_23 = arith.constant 0 : index
    %55 = vector.load %arg7[%c0_22, %c0_23] : memref<1x128xf32, #tpu.memory_space<vmem>>, vector<1x128xf32>
    %c0_24 = arith.constant 0 : index
    %c0_25 = arith.constant 0 : index
    %56 = vector.load %arg8[%c0_24, %c0_25] : memref<1x128xf32, #tpu.memory_space<vmem>>, vector<1x128xf32>
    %cst_26 = arith.constant dense<0.000000e+00> : vector<16xf32>
    %57 = vector.multi_reduction <add>, %54, %cst_26 [1] : vector<16x128xf32> to vector<16xf32>
    %58 = vector.shape_cast %57 : vector<16xf32> to vector<16x1xf32>
    %cst_27 = arith.constant 1.280000e+02 : f32
    %59 = vector.broadcast %cst_27 : f32 to vector<16x1xf32>
    %60 = arith.divf %58, %59 : vector<16x1xf32>
    %61 = vector.broadcast %60 : vector<16x1xf32> to vector<16x128xf32>
    %62 = arith.subf %54, %61 : vector<16x128xf32>
    %63 = arith.mulf %62, %62 : vector<16x128xf32>
    %cst_28 = arith.constant dense<0.000000e+00> : vector<16xf32>
    %64 = vector.multi_reduction <add>, %63, %cst_28 [1] : vector<16x128xf32> to vector<16xf32>
    %65 = vector.shape_cast %64 : vector<16xf32> to vector<16x1xf32>
    %cst_29 = arith.constant 1.280000e+02 : f32
    %66 = vector.broadcast %cst_29 : f32 to vector<16x1xf32>
    %67 = arith.divf %65, %66 : vector<16x1xf32>
    %68 = vector.broadcast %60 : vector<16x1xf32> to vector<16x128xf32>
    %69 = arith.subf %54, %68 : vector<16x128xf32>
    %cst_30 = arith.constant 9.99999996E-13 : f32
    %70 = vector.broadcast %cst_30 : f32 to vector<16x1xf32>
    %71 = arith.addf %67, %70 : vector<16x1xf32>
    %72 = math.rsqrt %71 : vector<16x1xf32>
    %73 = vector.broadcast %72 : vector<16x1xf32> to vector<16x128xf32>
    %74 = arith.mulf %69, %73 : vector<16x128xf32>
    %75 = vector.broadcast %55 : vector<1x128xf32> to vector<16x128xf32>
    %76 = arith.mulf %74, %75 : vector<16x128xf32>
    %77 = vector.broadcast %56 : vector<1x128xf32> to vector<16x128xf32>
    %78 = arith.addf %76, %77 : vector<16x128xf32>
    %79 = arith.truncf %78 : vector<16x128xf32> to vector<16x128xbf16>
    %c0_31 = arith.constant 0 : index
    %c0_32 = arith.constant 0 : index
    %80 = vector.load %arg9[%c0_31, %c0_32] : memref<128x256xbf16, #tpu.memory_space<vmem>>, vector<128x256xbf16>
    %cst_33 = arith.constant dense<0.000000e+00> : vector<16x256xf32>
    %81 = tpu.matmul %79, %80, %cst_33 {dimension_numbers = #tpu.dot_dimension_numbers<[1], [0], [0], [1], [0, 0, 1, 1], [], []>} : vector<16x128xbf16>, vector<128x256xbf16>, vector<16x256xf32> -> vector<16x256xf32>
    %c0_34 = arith.constant 0 : index
    %c0_35 = arith.constant 0 : index
    %82 = vector.load %arg10[%c0_34, %c0_35] : memref<1x256xf32, #tpu.memory_space<vmem>>, vector<1x256xf32>
    %83 = vector.broadcast %82 : vector<1x256xf32> to vector<16x256xf32>
    %84 = arith.addf %81, %83 : vector<16x256xf32>
    %85 = arith.mulf %84, %84 : vector<16x256xf32>
    %86 = arith.mulf %84, %85 : vector<16x256xf32>
    %cst_36 = arith.constant 4.471500e-02 : f32
    %87 = vector.broadcast %cst_36 : f32 to vector<16x256xf32>
    %88 = arith.mulf %87, %86 : vector<16x256xf32>
    %89 = arith.addf %84, %88 : vector<16x256xf32>
    %cst_37 = arith.constant 0.797884583 : f32
    %90 = vector.broadcast %cst_37 : f32 to vector<16x256xf32>
    %91 = arith.mulf %90, %89 : vector<16x256xf32>
    %92 = math.tanh %91 : vector<16x256xf32>
    %cst_38 = arith.constant 1.000000e+00 : f32
    %93 = vector.broadcast %cst_38 : f32 to vector<16x256xf32>
    %94 = arith.addf %93, %92 : vector<16x256xf32>
    %cst_39 = arith.constant 5.000000e-01 : f32
    %95 = vector.broadcast %cst_39 : f32 to vector<16x256xf32>
    %96 = arith.mulf %95, %94 : vector<16x256xf32>
    %97 = arith.mulf %84, %96 : vector<16x256xf32>
    %98 = arith.truncf %97 : vector<16x256xf32> to vector<16x256xbf16>
    %c0_40 = arith.constant 0 : index
    %c0_41 = arith.constant 0 : index
    %99 = vector.load %arg11[%c0_40, %c0_41] : memref<256x128xbf16, #tpu.memory_space<vmem>>, vector<256x128xbf16>
    %cst_42 = arith.constant dense<0.000000e+00> : vector<16x128xf32>
    %100 = tpu.matmul %98, %99, %cst_42 {dimension_numbers = #tpu.dot_dimension_numbers<[1], [0], [0], [1], [0, 0, 1, 1], [], []>} : vector<16x256xbf16>, vector<256x128xbf16>, vector<16x128xf32> -> vector<16x128xf32>
    %c0_43 = arith.constant 0 : index
    %c0_44 = arith.constant 0 : index
    %101 = vector.load %arg12[%c0_43, %c0_44] : memref<1x128xf32, #tpu.memory_space<vmem>>, vector<1x128xf32>
    %102 = vector.broadcast %101 : vector<1x128xf32> to vector<16x128xf32>
    %103 = arith.addf %100, %102 : vector<16x128xf32>
    %104 = arith.extf %79 : vector<16x128xbf16> to vector<16x128xf32>
    %105 = arith.addf %103, %104 : vector<16x128xf32>
    %c0_45 = arith.constant 0 : index
    %c0_46 = arith.constant 0 : index
    %106 = vector.load %arg13[%c0_45, %c0_46] : memref<1x128xf32, #tpu.memory_space<vmem>>, vector<1x128xf32>
    %c0_47 = arith.constant 0 : index
    %c0_48 = arith.constant 0 : index
    %107 = vector.load %arg14[%c0_47, %c0_48] : memref<1x128xf32, #tpu.memory_space<vmem>>, vector<1x128xf32>
    %cst_49 = arith.constant dense<0.000000e+00> : vector<16xf32>
    %108 = vector.multi_reduction <add>, %105, %cst_49 [1] : vector<16x128xf32> to vector<16xf32>
    %109 = vector.shape_cast %108 : vector<16xf32> to vector<16x1xf32>
    %cst_50 = arith.constant 1.280000e+02 : f32
    %110 = vector.broadcast %cst_50 : f32 to vector<16x1xf32>
    %111 = arith.divf %109, %110 : vector<16x1xf32>
    %112 = vector.broadcast %111 : vector<16x1xf32> to vector<16x128xf32>
    %113 = arith.subf %105, %112 : vector<16x128xf32>
    %114 = arith.mulf %113, %113 : vector<16x128xf32>
    %cst_51 = arith.constant dense<0.000000e+00> : vector<16xf32>
    %115 = vector.multi_reduction <add>, %114, %cst_51 [1] : vector<16x128xf32> to vector<16xf32>
    %116 = vector.shape_cast %115 : vector<16xf32> to vector<16x1xf32>
    %cst_52 = arith.constant 1.280000e+02 : f32
    %117 = vector.broadcast %cst_52 : f32 to vector<16x1xf32>
    %118 = arith.divf %116, %117 : vector<16x1xf32>
    %119 = vector.broadcast %111 : vector<16x1xf32> to vector<16x128xf32>
    %120 = arith.subf %105, %119 : vector<16x128xf32>
    %cst_53 = arith.constant 9.99999996E-13 : f32
    %121 = vector.broadcast %cst_53 : f32 to vector<16x1xf32>
    %122 = arith.addf %118, %121 : vector<16x1xf32>
    %123 = math.rsqrt %122 : vector<16x1xf32>
    %124 = vector.broadcast %123 : vector<16x1xf32> to vector<16x128xf32>
    %125 = arith.mulf %120, %124 : vector<16x128xf32>
    %126 = vector.broadcast %106 : vector<1x128xf32> to vector<16x128xf32>
    %127 = arith.mulf %125, %126 : vector<16x128xf32>
    %128 = vector.broadcast %107 : vector<1x128xf32> to vector<16x128xf32>
    %129 = arith.addf %127, %128 : vector<16x128xf32>
    %130 = arith.truncf %129 : vector<16x128xf32> to vector<16x128xbf16>
    %c0_54 = arith.constant 0 : index
    %c0_55 = arith.constant 0 : index
    %c0_56 = arith.constant 0 : index
    %131 = vector.load %arg15[%c0_54, %c0_55, %c0_56] : memref<1x16x128xbf16, #tpu.memory_space<vmem>>, vector<1x16x128xbf16>
    %132 = vector.shape_cast %131 : vector<1x16x128xbf16> to vector<16x128xbf16>
    %133 = vector.shape_cast %130 : vector<16x128xbf16> to vector<1x16x128xbf16>
    tpu.vector_store %arg15[%c0_54, %c0_55, %c0_56], %133 {strides = array<i32>} : memref<1x16x128xbf16, #tpu.memory_space<vmem>>, vector<1x16x128xbf16>,
    return
  }
  func.func @transform_0(%arg0: i32) -> (i32, i32, i32) {
    %c0_i32 = arith.constant 0 : i32
    %c0_i32_0 = arith.constant 0 : i32
    %c0_i32_1 = arith.constant 0 : i32
    return %arg0, %c0_i32, %c0_i32_0 : i32, i32, i32
  }
  func.func @transform_1(%arg0: i32) -> (i32, i32, i32) {
    %c0_i32 = arith.constant 0 : i32
    %c0_i32_0 = arith.constant 0 : i32
    %c0_i32_1 = arith.constant 0 : i32
    return %arg0, %c0_i32, %c0_i32_0 : i32, i32, i32
  }
  func.func @transform_2(%arg0: i32) -> (i32, i32) {
    %c0_i32 = arith.constant 0 : i32
    %c0_i32_0 = arith.constant 0 : i32
    %c0_i32_1 = arith.constant 0 : i32
    return %c0_i32, %c0_i32_0 : i32, i32
  }
  func.func @transform_3(%arg0: i32) -> (i32, i32) {
    %c0_i32 = arith.constant 0 : i32
    %c0_i32_0 = arith.constant 0 : i32
    %c0_i32_1 = arith.constant 0 : i32
    return %c0_i32, %c0_i32_0 : i32, i32
  }
  func.func @transform_4(%arg0: i32) -> (i32, i32) {
    %c0_i32 = arith.constant 0 : i32
    %c0_i32_0 = arith.constant 0 : i32
    %c0_i32_1 = arith.constant 0 : i32
    return %c0_i32, %c0_i32_0 : i32, i32
  }
  func.func @transform_5(%arg0: i32) -> (i32, i32) {
    %c0_i32 = arith.constant 0 : i32
    %c0_i32_0 = arith.constant 0 : i32
    %c0_i32_1 = arith.constant 0 : i32
    return %c0_i32, %c0_i32_0 : i32, i32
  }
  func.func @transform_6(%arg0: i32) -> (i32, i32) {
    %c0_i32 = arith.constant 0 : i32
    %c0_i32_0 = arith.constant 0 : i32
    %c0_i32_1 = arith.constant 0 : i32
    return %c0_i32, %c0_i32_0 : i32, i32
  }
  func.func @transform_7(%arg0: i32) -> (i32, i32) {
    %c0_i32 = arith.constant 0 : i32
    %c0_i32_0 = arith.constant 0 : i32
    %c0_i32_1 = arith.constant 0 : i32
    return %c0_i32, %c0_i32_0 : i32, i32
  }
  func.func @transform_8(%arg0: i32) -> (i32, i32) {
    %c0_i32 = arith.constant 0 : i32
    %c0_i32_0 = arith.constant 0 : i32
    %c0_i32_1 = arith.constant 0 : i32
    return %c0_i32, %c0_i32_0 : i32, i32
  }
  func.func @transform_9(%arg0: i32) -> (i32, i32) {
    %c0_i32 = arith.constant 0 : i32
    %c0_i32_0 = arith.constant 0 : i32
    %c0_i32_1 = arith.constant 0 : i32
    return %c0_i32, %c0_i32_0 : i32, i32
  }
  func.func @transform_10(%arg0: i32) -> (i32, i32) {
    %c0_i32 = arith.constant 0 : i32
    %c0_i32_0 = arith.constant 0 : i32
    %c0_i32_1 = arith.constant 0 : i32
    return %c0_i32, %c0_i32_0 : i32, i32
  }
  func.func @transform_11(%arg0: i32) -> (i32, i32) {
    %c0_i32 = arith.constant 0 : i32
    %c0_i32_0 = arith.constant 0 : i32
    %c0_i32_1 = arith.constant 0 : i32
    return %c0_i32, %c0_i32_0 : i32, i32
  }
  func.func @transform_12(%arg0: i32) -> (i32, i32) {
    %c0_i32 = arith.constant 0 : i32
    %c0_i32_0 = arith.constant 0 : i32
    %c0_i32_1 = arith.constant 0 : i32
    return %c0_i32, %c0_i32_0 : i32, i32
  }
  func.func @transform_13(%arg0: i32) -> (i32, i32) {
    %c0_i32 = arith.constant 0 : i32
    %c0_i32_0 = arith.constant 0 : i32
    %c0_i32_1 = arith.constant 0 : i32
    return %c0_i32, %c0_i32_0 : i32, i32
  }
  func.func @transform_14(%arg0: i32) -> (i32, i32, i32) {
    %c0_i32 = arith.constant 0 : i32
    %c0_i32_0 = arith.constant 0 : i32
    %c0_i32_1 = arith.constant 0 : i32
    return %arg0, %c0_i32, %c0_i32_0 : i32, i32, i32
  }
}

module attributes {stable_mosaic.version = 11 : i64} {
  func.func @_dense_kernel(%arg0: i32, %arg1: i32, %arg2: memref<6x128xbf16, #tpu.memory_space<vmem>>, %arg3: memref<128x128xbf16, #tpu.memory_space<vmem>>, %arg4: memref<1x128xf32, #tpu.memory_space<vmem>>, %arg5: memref<6x128xf32, #tpu.memory_space<vmem>>) attributes {dimension_semantics = [#tpu.dimension_semantics<parallel>, #tpu.dimension_semantics<parallel>], iteration_bounds = array<i64: 1, 1>, scalar_prefetch = 0 : i64, scratch_operands = 0 : i64, tpu.core_type = #tpu.core_type<tc>, window_params = [{transform_indices = @transform_0, window_bounds = array<i64: 6, 128>}, {transform_indices = @transform_1, window_bounds = array<i64: 128, 128>}, {transform_indices = @transform_2, window_bounds = array<i64: 1, 128>}, {transform_indices = @transform_3, window_bounds = array<i64: 6, 128>}]} {
    %c0 = arith.constant 0 : index
    %c0_0 = arith.constant 0 : index
    %0 = vector.load %arg2[%c0, %c0_0] : memref<6x128xbf16, #tpu.memory_space<vmem>>, vector<6x128xbf16>
    %c0_1 = arith.constant 0 : index
    %c0_2 = arith.constant 0 : index
    %1 = vector.load %arg3[%c0_1, %c0_2] : memref<128x128xbf16, #tpu.memory_space<vmem>>, vector<128x128xbf16>
    %cst = arith.constant dense<0.000000e+00> : vector<6x128xf32>
    %2 = tpu.matmul %0, %1, %cst {dimension_numbers = #tpu.dot_dimension_numbers<[1], [0], [0], [1], [0, 0, 1, 1], [], []>} : vector<6x128xbf16>, vector<128x128xbf16>, vector<6x128xf32> -> vector<6x128xf32>
    %c0_3 = arith.constant 0 : index
    %c0_4 = arith.constant 0 : index
    %3 = vector.load %arg4[%c0_3, %c0_4] : memref<1x128xf32, #tpu.memory_space<vmem>>, vector<1x128xf32>
    %4 = vector.broadcast %3 : vector<1x128xf32> to vector<6x128xf32>
    %5 = arith.addf %2, %4 : vector<6x128xf32>
    %6 = math.tanh %5 : vector<6x128xf32>
    %c0_5 = arith.constant 0 : index
    %c0_6 = arith.constant 0 : index
    %7 = vector.load %arg5[%c0_5, %c0_6] : memref<6x128xf32, #tpu.memory_space<vmem>>, vector<6x128xf32>
    tpu.vector_store %arg5[%c0_5, %c0_6], %6 {strides = array<i32>} : memref<6x128xf32, #tpu.memory_space<vmem>>, vector<6x128xf32>,
    return
  }
  func.func @transform_0(%arg0: i32, %arg1: i32) -> (i32, i32) {
    %c0_i32 = arith.constant 0 : i32
    %c0_i32_0 = arith.constant 0 : i32
    return %arg1, %c0_i32 : i32, i32
  }
  func.func @transform_1(%arg0: i32, %arg1: i32) -> (i32, i32) {
    %c0_i32 = arith.constant 0 : i32
    %c0_i32_0 = arith.constant 0 : i32
    return %c0_i32, %arg0 : i32, i32
  }
  func.func @transform_2(%arg0: i32, %arg1: i32) -> (i32, i32) {
    %c0_i32 = arith.constant 0 : i32
    %c0_i32_0 = arith.constant 0 : i32
    return %c0_i32, %arg0 : i32, i32
  }
  func.func @transform_3(%arg0: i32, %arg1: i32) -> (i32, i32) {
    %c0_i32 = arith.constant 0 : i32
    return %arg1, %arg0 : i32, i32
  }
}

</mosaic_0001>

<llo_original>
// kernel: bert_parts_forward.5
$region0: #{bert_parts_forward.5}
  #allocation0 [shape = 'u32[]', space=smem, size = 0x4, offset = 0x4, fixed_abs, tag = 'smem constant byte address 0x4 - core index']
  #allocation1 [shape = 'u32[144,128]{1,0:T(1,128)}', space=vmem, size = 0x12000, scoped, tag = 'internal scratch']
  %s0 = inlined_call_operand.vmem [shape: bf16[6,16,128], index: 0, kind: input, shape index: {}]
  %s1 = inlined_call_operand.vmem [shape: f32[16,128], index: 1, kind: input, shape index: {}]
  %s2 = inlined_call_operand.vmem [shape: f32[1,128], index: 2, kind: input, shape index: {}]
  %s3 = inlined_call_operand.vmem [shape: f32[1,128], index: 3, kind: input, shape index: {}]
  %s4 = inlined_call_operand.vmem [shape: f32[1,128], index: 4, kind: input, shape index: {}]
  %s5 = inlined_call_operand.vmem [shape: bf16[6,16,128], index: 5, kind: output, shape index: {}]
  %s6 = sld [smem:[#allocation0]]
  $region53: #{bert_parts_forward.5} parent=0
    _
  %s8 = ssub.s32 1, %s6
  %s9 = scalar_select 0, %s8, %s6
  loop: start=0, step=1, limit=8
  $region2: #{bert_parts_forward.5} parent=0 // loop_pre_header
    _
  $region3: #{bert_parts_forward.5} parent=0 // loop_header
    %s11 = sphi 0, %s15
    %p12 = scmp.ge.s32.totalorder %s11, 8
    %s21 = sphi 0, %s23
    %s24 = sphi 0, %s21
    %s25 = sphi 0, %s24
    %s41 = sphi 0, %s25
    %s45 = sphi 0, %s45
    %s47 = sphi 0, %s45
    %s48 = sphi 0, %s47
    %s62 = sphi 0, %s48
    %s66 = sphi 0, %s66
    %s68 = sphi 0, %s66
    %s69 = sphi 0, %s68
    %s83 = sphi 0, %s69
    %s87 = sphi 0, %s87
    %s89 = sphi 0, %s87
    %s90 = sphi 0, %s89
    %s104 = sphi 0, %s90
    %s108 = sphi 0, %s108
    %s110 = sphi 0, %s108
    %s111 = sphi 0, %s110
    %s125 = sphi 0, %s111
    %s131 = sphi 0, %s133
    %s134 = sphi 0, %s131
    %s135 = sphi 0, %s134
    %s151 = sphi 0, %s135
  $region4: #{bert_parts_forward.5} parent=0 // loop_header_branch
    %14 = sbr.rel (%p12) target = $region8
  $region5: #{bert_parts_forward.5} parent=0 // loop_body
    %s16 = ssub.s32 %s11, 1
    %s17 = ssub.s32 %s11, 2
    %s18 = sadd.s32 %s11, 1
    %s19 = ssub.s32 %s11, %s18
    %p20 = scmp.eq.s32.totalorder %s19, 0
    %s22 = sadd.s32 %s21, 1
    %s23 = scalar_select %p20, %s21, %s22
    %p26 = pneg %p20
    %p27 = scmp.eq.s32.totalorder %s11, 5
    %p28 = por %p26, %p27
    %p29 = scmp.ne.s32.totalorder %s21, %s24
    %p30 = scmp.eq.s32.totalorder %s11, 0
    %p31 = por %p29, %p30
    %p32 = scmp.ne.s32.totalorder %s21, %s24
    %p33 = scmp.eq.s32.totalorder %s16, 5
    %p34 = por %p32, %p33
    %p35 = scmp.ne.s32.totalorder %s24, %s25
    %p36 = scmp.eq.s32.totalorder %s16, 0
    %p37 = por %p35, %p36
    %p38 = scmp.ne.s32.totalorder %s24, %s25
    %p39 = scmp.eq.s32.totalorder %s17, 5
    %p40 = por %p38, %p39
    %p42 = scmp.ne.s32.totalorder %s25, %s41
    %p43 = scmp.eq.s32.totalorder %s17, 0
    %p44 = por %p42, %p43
    %s46 = sadd.s32 %s45, 1
    %p49 = scmp.eq.s32.totalorder %s11, 5
    %p50 = scmp.ne.s32.totalorder %s45, %s47
    %p51 = scmp.eq.s32.totalorder %s11, 0
    %p52 = por %p50, %p51
    %p53 = scmp.ne.s32.totalorder %s45, %s47
    %p54 = scmp.eq.s32.totalorder %s16, 5
    %p55 = por %p53, %p54
    %p56 = scmp.ne.s32.totalorder %s47, %s48
    %p57 = scmp.eq.s32.totalorder %s16, 0
    %p58 = por %p56, %p57
    %p59 = scmp.ne.s32.totalorder %s47, %s48
    %p60 = scmp.eq.s32.totalorder %s17, 5
    %p61 = por %p59, %p60
    %p63 = scmp.ne.s32.totalorder %s48, %s62
    %p64 = scmp.eq.s32.totalorder %s17, 0
    %p65 = por %p63, %p64
    %s67 = sadd.s32 %s66, 1
    %p70 = scmp.eq.s32.totalorder %s11, 5
    %p71 = scmp.ne.s32.totalorder %s66, %s68
    %p72 = scmp.eq.s32.totalorder %s11, 0
    %p73 = por %p71, %p72
    %p74 = scmp.ne.s32.totalorder %s66, %s68
    %p75 = scmp.eq.s32.totalorder %s16, 5
    %p76 = por %p74, %p75
    %p77 = scmp.ne.s32.totalorder %s68, %s69
    %p78 = scmp.eq.s32.totalorder %s16, 0
    %p79 = por %p77, %p78
    %p80 = scmp.ne.s32.totalorder %s68, %s69
    %p81 = scmp.eq.s32.totalorder %s17, 5
    %p82 = por %p80, %p81
    %p84 = scmp.ne.s32.totalorder %s69, %s83
    %p85 = scmp.eq.s32.totalorder %s17, 0
    %p86 = por %p84, %p85
    %s88 = sadd.s32 %s87, 1
    %p91 = scmp.eq.s32.totalorder %s11, 5
    %p92 = scmp.ne.s32.totalorder %s87, %s89
    %p93 = scmp.eq.s32.totalorder %s11, 0
    %p94 = por %p92, %p93
    %p95 = scmp.ne.s32.totalorder %s87, %s89
    %p96 = scmp.eq.s32.totalorder %s16, 5
    %p97 = por %p95, %p96
    %p98 = scmp.ne.s32.totalorder %s89, %s90
    %p99 = scmp.eq.s32.totalorder %s16, 0
    %p100 = por %p98, %p99
    %p101 = scmp.ne.s32.totalorder %s89, %s90
    %p102 = scmp.eq.s32.totalorder %s17, 5
    %p103 = por %p101, %p102
    %p105 = scmp.ne.s32.totalorder %s90, %s104
    %p106 = scmp.eq.s32.totalorder %s17, 0
    %p107 = por %p105, %p106
    %s109 = sadd.s32 %s108, 1
    %p112 = scmp.eq.s32.totalorder %s11, 5
    %p113 = scmp.ne.s32.totalorder %s108, %s110
    %p114 = scmp.eq.s32.totalorder %s11, 0
    %p115 = por %p113, %p114
    %p116 = scmp.ne.s32.totalorder %s108, %s110
    %p117 = scmp.eq.s32.totalorder %s16, 5
    %p118 = por %p116, %p117
    %p119 = scmp.ne.s32.totalorder %s110, %s111
    %p120 = scmp.eq.s32.totalorder %s16, 0
    %p121 = por %p119, %p120
    %p122 = scmp.ne.s32.totalorder %s110, %s111
    %p123 = scmp.eq.s32.totalorder %s17, 5
    %p124 = por %p122, %p123
    %p126 = scmp.ne.s32.totalorder %s111, %s125
    %p127 = scmp.eq.s32.totalorder %s17, 0
    %p128 = por %p126, %p127
    %s129 = ssub.s32 %s11, %s18
    %p130 = scmp.eq.s32.totalorder %s129, 0
    %s132 = sadd.s32 %s131, 1
    %s133 = scalar_select %p130, %s131, %s132
    %p136 = pneg %p130
    %p137 = scmp.eq.s32.totalorder %s11, 5
    %p138 = por %p136, %p137
    %p139 = scmp.ne.s32.totalorder %s131, %s134
    %p140 = scmp.eq.s32.totalorder %s11, 0
    %p141 = por %p139, %p140
    %p142 = scmp.ne.s32.totalorder %s131, %s134
    %p143 = scmp.eq.s32.totalorder %s16, 5
    %p144 = por %p142, %p143
    %p145 = scmp.ne.s32.totalorder %s134, %s135
    %p146 = scmp.eq.s32.totalorder %s16, 0
    %p147 = por %p145, %p146
    %p148 = scmp.ne.s32.totalorder %s134, %s135
    %p149 = scmp.eq.s32.totalorder %s17, 5
    %p150 = por %p148, %p149
    %p152 = scmp.ne.s32.totalorder %s135, %s151
    %p153 = scmp.eq.s32.totalorder %s17, 0
    %p154 = por %p152, %p153
    %p155 = scmp.le.s32.totalorder 1, %s11
    %p156 = scmp.lt.s32.totalorder %s11, 7
    %p157 = pnand %p155, %p156
    %p158 = pneg %p157
    // Predicated region
    $region9: #{bert_parts_forward.5} parent=5 // pred_check
      _
    $region10: #{bert_parts_forward.5} parent=5 // pred_check_branch
      %160 = sbr.rel (%p157) target = $region12
    $region11: #{bert_parts_forward.5} parent=5 // pred_region
      %s161 = ssub.s32 %s11, 1
      // Predicated region
      $region13: #{bert_parts_forward.5} parent=11 // pred_check
        %p162 = pneg %p58
      $region14: #{bert_parts_forward.5} parent=11 // pred_check_branch
        %164 = sbr.rel (%p162) target = $region16
      $region15: #{bert_parts_forward.5} parent=11 // pred_region
        _
      $region16: #{bert_parts_forward.5} parent=11 // pred_fallthru
        _
      // Predicated region
      $region17: #{bert_parts_forward.5} parent=11 // pred_check
        %p165 = pneg %p79
      $region18: #{bert_parts_forward.5} parent=11 // pred_check_branch
        %167 = sbr.rel (%p165) target = $region20
      $region19: #{bert_parts_forward.5} parent=11 // pred_region
        _
      $region20: #{bert_parts_forward.5} parent=11 // pred_fallthru
        _
      // Predicated region
      $region21: #{bert_parts_forward.5} parent=11 // pred_check
        %p168 = pneg %p100
      $region22: #{bert_parts_forward.5} parent=11 // pred_check_branch
        %170 = sbr.rel (%p168) target = $region24
      $region23: #{bert_parts_forward.5} parent=11 // pred_region
        _
      $region24: #{bert_parts_forward.5} parent=11 // pred_fallthru
        _
      // Predicated region
      $region25: #{bert_parts_forward.5} parent=11 // pred_check
        %p171 = pneg %p121
      $region26: #{bert_parts_forward.5} parent=11 // pred_check_branch
        %173 = sbr.rel (%p171) target = $region28
      $region27: #{bert_parts_forward.5} parent=11 // pred_region
        _
      $region28: #{bert_parts_forward.5} parent=11 // pred_fallthru
        _
    $region12: #{bert_parts_forward.5} parent=5 // pred_fallthru
      _
    %p174 = scmp.lt.s32.totalorder %s11, 6
    // Predicated region
    $region29: #{bert_parts_forward.5} parent=5 // pred_check
      %p175 = pneg %p174
    $region30: #{bert_parts_forward.5} parent=5 // pred_check_branch
      %177 = sbr.rel (%p175) target = $region32
    $region31: #{bert_parts_forward.5} parent=5 // pred_region
      // Predicated region
      $region33: #{bert_parts_forward.5} parent=31 // pred_check
        %p178 = pneg %p31
      $region34: #{bert_parts_forward.5} parent=31 // pred_check_branch
        %180 = sbr.rel (%p178) target = $region36
      $region35: #{bert_parts_forward.5} parent=31 // pred_region
        %p181 = scmp.lt.s32.totalorder %s11, 5
        %s182 = scalar_select %p181, %s11, 5
        %s183 = smul.addr %s182, 2
        %s184 = smul.addr %s183, 4
        %s185 = scalar_lea.vmem %s0, %s184
      $region36: #{bert_parts_forward.5} parent=31 // pred_fallthru
        _
    $region32: #{bert_parts_forward.5} parent=5 // pred_fallthru
      _
    %p186 = scmp.le.s32.totalorder 1, %s11
    %p187 = scmp.lt.s32.totalorder %s11, 7
    %p188 = pnand %p186, %p187
    %p189 = pneg %p188
    // Predicated region
    $region37: #{bert_parts_forward.5} parent=5 // pred_check
      _
    $region38: #{bert_parts_forward.5} parent=5 // pred_check_branch
      %191 = sbr.rel (%p188) target = $region40
    $region39: #{bert_parts_forward.5} parent=5 // pred_region
      %s192 = ssub.s32 %s11, 1
      %p193 = scmp.lt.s32.totalorder %s16, 5
      %s194 = scalar_select %p193, %s16, 5
      %s195 = smul.addr %s194, 2
      %s196 = smul.addr %s195, 4
      %s197 = scalar_lea.vmem %s0, %s196
      %p198 = pneg %p37
      %p199 = pneg %p34
      %p200 = pneg %p58
      %p201 = pneg %p55
      %p202 = pneg %p79
      %p203 = pneg %p76
      %p204 = pneg %p100
      %p205 = pneg %p97
      %p206 = pneg %p121
      %p207 = pneg %p118
      %p208 = pneg %p147
      %p209 = pneg %p144
      %p210 = scmp.lt.s32.totalorder %s16, 5
      %s211 = scalar_select %p210, %s16, 5
      %s212 = smul.addr %s211, 2
      %s213 = smul.addr %s212, 4
      %s214 = scalar_lea.vmem %s5, %s213
      %p215 = scmp.lt.s32.totalorder %s16, 5
      %s216 = scalar_select %p215, %s16, 5
      %s217 = smul.addr %s216, 2
      %s218 = smul.addr %s217, 4
      %s219 = scalar_lea.vmem %s0, %s218
      %p220 = scmp.lt.s32.totalorder %s16, 5
      %s221 = scalar_select %p220, %s16, 5
      %s222 = smul.addr %s221, 2
      %s223 = smul.addr %s222, 4
      %s224 = scalar_lea.vmem %s5, %s223
      %v225 = vld [vmem:[%s219] sm:$0xf]
      %v226 = vld [vmem:[%s219 + $0x4] sm:$0xf]
      %v227 = vunpack.c.l.bf16 %v225
      %v228 = vunpack.c.l.bf16 %v226
      %v229 = vld [vmem:[%s1] sm:$0xff]
      %v230 = vld [vmem:[%s1 + $0x8] sm:$0xff]
      %v231 = vadd.f32 %v227, %v229
      %v232 = vadd.f32 %v228, %v230
      %v233 = vld [vmem:[%s2] sm:$0x1]
      %v235 = vlaneseq
      %v236 = vshrl.u32 %v235, 7
      %v237 = vsub.s32 0, %v236
      %v238 = vrot.slane %v233, %v237
      %v240 = vadd.f32 %v231, %v238
      %v241 = vadd.f32 %v232, %v238
      %v242 = vld [vmem:[%s3] sm:$0x1]
      %v243 = vld [vmem:[%s4] sm:$0x1]
      %244 = vadd.xlane.f32.xlu0 %v240
      %v245 = vpop.xlane.xlu0 %244
      %246 = vadd.xlane.f32.xlu0 %v241
      %v247 = vpop.xlane.xlu0 %246
      %v248 = vrcp.pop 128.0
      %v249 = vmul.f32 %v245, %v248
      %v250 = vmul.f32 %v247, %v248
      %v251 = vsub.f32 %v240, %v249
      %v252 = vsub.f32 %v241, %v250
      %v253 = vmul.f32 %v251, %v251
      %v254 = vmul.f32 %v252, %v252
      %255 = vadd.xlane.f32.xlu0 %v253
      %v256 = vpop.xlane.xlu0 %255
      %257 = vadd.xlane.f32.xlu0 %v254
      %v258 = vpop.xlane.xlu0 %257
      %v259 = vmul.f32 %v256, %v248
      %v260 = vmul.f32 %v258, %v248
      %v261 = vadd.f32 %v259, 1e-12
      %v262 = vadd.f32 %v260, 1e-12
      %v263 = vrsqrt.pop %v261
      %v264 = vrsqrt.pop %v262
      %v265 = vmul.f32 %v251, %v263
      %v266 = vmul.f32 %v252, %v264
      %v268 = vlaneseq
      %v269 = vshrl.u32 %v268, 7
      %v270 = vsub.s32 0, %v269
      %v271 = vrot.slane %v242, %v270
      %v273 = vmul.f32 %v265, %v271
      %v274 = vmul.f32 %v266, %v271
      %v276 = vlaneseq
      %v277 = vshrl.u32 %v276, 7
      %v278 = vsub.s32 0, %v277
      %v279 = vrot.slane %v243, %v278
      %v281 = vadd.f32 %v273, %v279
      %v282 = vadd.f32 %v274, %v279
      %v283 = vpack.c.bf16 %v282, %v281
      %v285 = vunpack.c.l.b16 %v283
      %v286 = vunpack.c.h.b16 %v283
      %v287 = vpack.c.b16 %v285, %v285
      %v288 = vpack.c.b16 %v286, %v286
      %291 = vst [vmem:[%s224] sm:$0xf] %v287
      %292 = vst [vmem:[%s224 + $0x4] sm:$0xf] %v288
      %p293 = scmp.lt.s32.totalorder %s16, 5
      %s294 = scalar_select %p293, %s16, 5
      %s295 = smul.addr %s294, 2
      %s296 = smul.addr %s295, 4
      %s297 = scalar_lea.vmem %s5, %s296
      // Predicated region
      $region41: #{bert_parts_forward.5} parent=39 // pred_check
        %p298 = pneg %p144
      $region42: #{bert_parts_forward.5} parent=39 // pred_check_branch
        %300 = sbr.rel (%p298) target = $region44
      $region43: #{bert_parts_forward.5} parent=39 // pred_region
        _
      $region44: #{bert_parts_forward.5} parent=39 // pred_fallthru
        _
    $region40: #{bert_parts_forward.5} parent=5 // pred_fallthru
      _
    %p301 = scmp.le.s32.totalorder 2, %s11
    // Predicated region
    $region45: #{bert_parts_forward.5} parent=5 // pred_check
      %p302 = pneg %p301
    $region46: #{bert_parts_forward.5} parent=5 // pred_check_branch
      %304 = sbr.rel (%p302) target = $region48
    $region47: #{bert_parts_forward.5} parent=5 // pred_region
      %s305 = ssub.s32 %s11, 2
      // Predicated region
      $region49: #{bert_parts_forward.5} parent=47 // pred_check
        %p306 = pneg %p150
      $region50: #{bert_parts_forward.5} parent=47 // pred_check_branch
        %308 = sbr.rel (%p306) target = $region52
      $region51: #{bert_parts_forward.5} parent=47 // pred_region
        %p309 = scmp.lt.s32.totalorder %s17, 5
        %s310 = scalar_select %p309, %s17, 5
        %s311 = smul.addr %s310, 2
        %s312 = smul.addr %s311, 4
        %s313 = scalar_lea.vmem %s5, %s312
      $region52: #{bert_parts_forward.5} parent=47 // pred_fallthru
        _
    $region48: #{bert_parts_forward.5} parent=5 // pred_fallthru
      _
  $region6: #{bert_parts_forward.5} parent=0 // loop_footer
    %s15 = sadd.s32 1, %s11
  $region7: #{bert_parts_forward.5} parent=0 // loop_footer_branch
    %10 = sbr.rel target = $region3
  $region8: #{bert_parts_forward.5} parent=0 // loop_exit
    _

// kernel: bert_parts_forward.9
$region0: #{bert_parts_forward.9}
  #allocation0 [shape = 'u32[]', space=smem, size = 0x4, offset = 0x4, fixed_abs, tag = 'smem constant byte address 0x4 - core index']
  #allocation1 [shape = 'u32[144,128]{1,0:T(1,128)}', space=vmem, size = 0x12000, scoped, tag = 'internal scratch']
  %s0 = inlined_call_operand.vmem [shape: s32[3,1], index: 0, kind: input, shape index: {}]
  %s1 = inlined_call_operand.vmem [shape: s32[3,1], index: 1, kind: input, shape index: {}]
  %s2 = inlined_call_operand.vmem [shape: f32[6,128], index: 2, kind: input, shape index: {}]
  %s3 = inlined_call_operand.hbm [shape: f32[3,128], index: 3, kind: output, shape index: {}]
  %s4 = sld [smem:[#allocation0]]
  $region22: #{bert_parts_forward.9} parent=0
    _
  %s6 = ssub.s32 1, %s4
  %s7 = scalar_select 0, %s6, %s4
  $region1: #{bert_parts_forward.9} parent=0
    #allocation2 [shape = 'u8[2048]{0}', space=vmem, size = 0x800, scoped, tag = 'output window, operand 0, single buffered']
    #allocation3 [shape = 's32[1]{0}', space=sflag, size = 0x4, scoped, tag = 'scoped memory for bert_parts_forward.9']
    %8 = vsyncpa [#allocation3], 0
    // Predicated region
    $region2: #{bert_parts_forward.9} parent=1 // pred_check
      _
    $region3: #{bert_parts_forward.9} parent=1 // pred_check_branch
      %10 = sbr.rel (0) target = $region5
    $region4: #{bert_parts_forward.9} parent=1 // pred_region
      _
    $region5: #{bert_parts_forward.9} parent=1 // pred_fallthru
      _
    // Predicated region
    $region6: #{bert_parts_forward.9} parent=1 // pred_check
      _
    $region7: #{bert_parts_forward.9} parent=1 // pred_check_branch
      %12 = sbr.rel (0) target = $region9
    $region8: #{bert_parts_forward.9} parent=1 // pred_region
      _
    $region9: #{bert_parts_forward.9} parent=1 // pred_fallthru
      _
    // Predicated region
    $region10: #{bert_parts_forward.9} parent=1 // pred_check
      _
    $region11: #{bert_parts_forward.9} parent=1 // pred_check_branch
      %14 = sbr.rel (0) target = $region13
    $region12: #{bert_parts_forward.9} parent=1 // pred_region
      _
    $region13: #{bert_parts_forward.9} parent=1 // pred_fallthru
      _
    %v15 = vld [vmem:[%s0] sm:$0x7]
    %v16 = vld [vmem:[%s1] sm:$0x7]
    %v17 = vlaneseq
    %v18 = vand.u32 %v17, 127
    %19 = vset.pattern.permute.xlu0 0
    %20 = vperm.xlu0 %19, %v15
    %v21 = vpop.permute.xlu0 %20
    %vm22 = vcmp.ge.s32.totalorder %v18, %v21
    %v23 = vadd.s32 %v15, %v16
    %24 = vset.pattern.permute.xlu0 0
    %25 = vperm.xlu0 %24, %v23
    %v26 = vpop.permute.xlu0 %25
    %vm27 = vcmp.lt.s32.totalorder %v18, %v26
    %vm28 = vmand %vm22, %vm27
    %v29 = vsel %vm28, 1, 0
    %v30 = vcvt.s32.f32 %v29
    %vm31 = vcmp.gt.s32.totalorder %v16, 1
    %v32 = vsel %vm31, %v16, 1
    %v33 = vcvt.s32.f32 %v32
    %v34 = vrcp.pop %v33
    %v35 = vmul.f32 1.0, %v34
    %37 = vset.pattern.permute.xlu0 0
    %38 = vperm.xlu0 %37, %v35
    %v39 = vpop.permute.xlu0 %38
    %v41 = vmul.f32 %v30, %v39
    %v42 = vld [vmem:[%s2] sm:$0x3f]
    %vm43 = vcmask 48128
    %v45 = vsel %vm43, %v41, 0
    %vm47 = vcmask 1045504
    %v49 = vsel %vm47, %v42, 0
    %51 = vmatprep.subr.mxu0 0.0
    %52 = vmatpush1.msra.mxu0 0.0
    %53 = vmatprep.subr.mxu0 0.0
    %54 = vmatpush1.msra.mxu0 0.0
    %55 = vmatprep.subr.mxu0 0.0
    %56 = vmatpush1.msra.mxu0 0.0
    %57 = vmatprep.subr.mxu0 0.0
    %58 = vmatpush1.msra.mxu0 0.0
    %59 = vmatprep.subr.mxu0 0.0
    %60 = vmatpush1.msra.mxu0 0.0
    %61 = vmatprep.subr.mxu0 0.0
    %62 = vmatpush1.msra.mxu0 0.0
    %63 = vmatprep.subr.mxu0 0.0
    %64 = vmatpush1.msra.mxu0 0.0
    %65 = vmatprep.subr.mxu0 0.0
    %66 = vmatpush1.msra.mxu0 0.0
    %67 = vmatprep.subr.mxu0 0.0
    %68 = vmatpush1.msra.mxu0 0.0
    %69 = vmatprep.subr.mxu0 0.0
    %70 = vmatpush1.msra.mxu0 0.0
    %71 = vmatprep.subr.mxu0 0.0
    %72 = vmatpush1.msra.mxu0 0.0
    %73 = vmatprep.subr.mxu0 0.0
    %74 = vmatpush1.msra.mxu0 0.0
    %75 = vmatprep.subr.mxu0 0.0
    %76 = vmatpush1.msra.mxu0 0.0
    %77 = vmatprep.subr.mxu0 0.0
    %78 = vmatpush1.msra.mxu0 0.0
    %79 = vmatprep.subr.mxu0 0.0
    %80 = vmatpush1.msra.mxu0 0.0
    %81 = vmatprep.subr.mxu0 0.0
    %82 = vmatpush1.msra.mxu0 %v49
    %83 = vmatprep.subr.mxu0 0.0
    %84 = vmatpush2.msra.mxu0 0.0
    %85 = vmatprep.subr.mxu0 0.0
    %86 = vmatpush2.msra.mxu0 0.0
    %87 = vmatprep.subr.mxu0 0.0
    %88 = vmatpush2.msra.mxu0 0.0
    %89 = vmatprep.subr.mxu0 0.0
    %90 = vmatpush2.msra.mxu0 0.0
    %91 = vmatprep.subr.mxu0 0.0
    %92 = vmatpush2.msra.mxu0 0.0
    %93 = vmatprep.subr.mxu0 0.0
    %94 = vmatpush2.msra.mxu0 0.0
    %95 = vmatprep.subr.mxu0 0.0
    %96 = vmatpush2.msra.mxu0 0.0
    %97 = vmatprep.subr.mxu0 0.0
    %98 = vmatpush2.msra.mxu0 0.0
    %99 = vmatprep.subr.mxu0 0.0
    %100 = vmatpush2.msra.mxu0 0.0
    %101 = vmatprep.subr.mxu0 0.0
    %102 = vmatpush2.msra.mxu0 0.0
    %103 = vmatprep.subr.mxu0 0.0
    %104 = vmatpush2.msra.mxu0 0.0
    %105 = vmatprep.subr.mxu0 0.0
    %106 = vmatpush2.msra.mxu0 0.0
    %107 = vmatprep.subr.mxu0 0.0
    %108 = vmatpush2.msra.mxu0 0.0
    %109 = vmatprep.subr.mxu0 0.0
    %110 = vmatpush2.msra.mxu0 0.0
    %111 = vmatprep.subr.mxu0 0.0
    %112 = vmatpush2.msra.mxu0 0.0
    %113 = vmatprep.subr.mxu0 0.0
    %114 = vmatpush2.msra.mxu0 0.0
    %115 = vmatprep.mubr.f32.mxu0 0.0
    %116 = vmatmul.mubr.f32.gmra.mxu0 %v45
    %v117 = vpop.f32.mrf.mxu0
    %v118 = vadd.f32 0.0, %v117
    %v119 = vpop.f32.mrf.mxu0
    %120 = vdwg.mxu0
    %121 = vst [vmem:[#allocation2] sm:$0x7] %v118
    // Predicated region
    $region14: #{bert_parts_forward.9} parent=1 // pred_check
      _
    $region15: #{bert_parts_forward.9} parent=1 // pred_check_branch
      %123 = sbr.rel (0) target = $region17
    $region16: #{bert_parts_forward.9} parent=1 // pred_region
      %s125 = ssub.s32 64, 64
      %126 = vsyncadd [#allocation3], %s125
      %s128 = sshll.u32 [#allocation2], 4
      %s129 = int_to_ptr.vmem [resolvable:$true] %s128
      %131 = dma.vmem_to_hbm [thread:$0]  %s129, 64, %s3, [#allocation3]
    $region17: #{bert_parts_forward.9} parent=1 // pred_fallthru
      _
    // Predicated region
    $region18: #{bert_parts_forward.9} parent=1 // pred_check
      _
    $region19: #{bert_parts_forward.9} parent=1 // pred_check_branch
      %133 = sbr.rel (0) target = $region21
    $region20: #{bert_parts_forward.9} parent=1 // pred_region
      %134 = dma.done [#allocation3], 64
    $region21: #{bert_parts_forward.9} parent=1 // pred_fallthru
      _
    %135 = vsyncpa [#allocation3], 1

// kernel: bert_parts_forward.8
$region0: #{bert_parts_forward.8}
  #allocation0 [shape = 'u32[]', space=smem, size = 0x4, offset = 0x4, fixed_abs, tag = 'smem constant byte address 0x4 - core index']
  #allocation1 [shape = 'u32[144,128]{1,0:T(1,128)}', space=vmem, size = 0x12000, scoped, tag = 'internal scratch']
  %s0 = inlined_call_operand.vmem [shape: bf16[6,128], index: 0, kind: input, shape index: {}]
  %s1 = inlined_call_operand.vmem [shape: bf16[128,128], index: 1, kind: input, shape index: {}]
  %s2 = inlined_call_operand.vmem [shape: f32[1,128], index: 2, kind: input, shape index: {}]
  %s3 = inlined_call_operand.vmem [shape: f32[6,128], index: 3, kind: output, shape index: {}]
  %s4 = sld [smem:[#allocation0]]
  $region22: #{bert_parts_forward.8} parent=0
    _
  %s6 = ssub.s32 1, %s4
  %s7 = scalar_select 0, %s6, %s4
  // Predicated region
  $region2: #{bert_parts_forward.8} parent=0 // pred_check
    _
  $region3: #{bert_parts_forward.8} parent=0 // pred_check_branch
    %9 = sbr.rel (0) target = $region5
  $region4: #{bert_parts_forward.8} parent=0 // pred_region
    _
  $region5: #{bert_parts_forward.8} parent=0 // pred_fallthru
    _
  // Predicated region
  $region6: #{bert_parts_forward.8} parent=0 // pred_check
    _
  $region7: #{bert_parts_forward.8} parent=0 // pred_check_branch
    %11 = sbr.rel (0) target = $region9
  $region8: #{bert_parts_forward.8} parent=0 // pred_region
    _
  $region9: #{bert_parts_forward.8} parent=0 // pred_fallthru
    _
  // Predicated region
  $region10: #{bert_parts_forward.8} parent=0 // pred_check
    _
  $region11: #{bert_parts_forward.8} parent=0 // pred_check_branch
    %13 = sbr.rel (0) target = $region13
  $region12: #{bert_parts_forward.8} parent=0 // pred_region
    _
  $region13: #{bert_parts_forward.8} parent=0 // pred_fallthru
    _
  %v15 = vld [vmem:[%s0] sm:$0x7]
  %v16 = vld [vmem:[%s1] sm:$0xf]
  %v17 = vld [vmem:[%s1 + $0x4] sm:$0xf]
  %v18 = vld [vmem:[%s1 + $0x8] sm:$0xf]
  %v19 = vld [vmem:[%s1 + $0xc] sm:$0xf]
  %v20 = vld [vmem:[%s1 + $0x10] sm:$0xf]
  %v21 = vld [vmem:[%s1 + $0x14] sm:$0xf]
  %v22 = vld [vmem:[%s1 + $0x18] sm:$0xf]
  %v23 = vld [vmem:[%s1 + $0x1c] sm:$0xf]
  %v24 = vld [vmem:[%s1 + $0x20] sm:$0xf]
  %v25 = vld [vmem:[%s1 + $0x24] sm:$0xf]
  %v26 = vld [vmem:[%s1 + $0x28] sm:$0xf]
  %v27 = vld [vmem:[%s1 + $0x2c] sm:$0xf]
  %v28 = vld [vmem:[%s1 + $0x30] sm:$0xf]
  %v29 = vld [vmem:[%s1 + $0x34] sm:$0xf]
  %v30 = vld [vmem:[%s1 + $0x38] sm:$0xf]
  %v31 = vld [vmem:[%s1 + $0x3c] sm:$0xf]
  %v32 = vld [vmem:[%s2] sm:$0x1]
  %v34 = vlaneseq
  %v35 = vshrl.u32 %v34, 7
  %v36 = vsub.s32 0, %v35
  %v37 = vrot.slane %v32, %v36
  %v55 = vunpack.c.l.b16 %v16
  %v56 = vunpack.c.l.b16 %v17
  %v57 = vunpack.c.l.b16 %v18
  %v58 = vunpack.c.l.b16 %v19
  %v59 = vunpack.c.l.b16 %v20
  %v60 = vunpack.c.l.b16 %v21
  %v61 = vunpack.c.l.b16 %v22
  %v62 = vunpack.c.l.b16 %v23
  %v63 = vunpack.c.l.b16 %v24
  %v64 = vunpack.c.l.b16 %v25
  %v65 = vunpack.c.l.b16 %v26
  %v66 = vunpack.c.l.b16 %v27
  %v67 = vunpack.c.l.b16 %v28
  %v68 = vunpack.c.l.b16 %v29
  %v69 = vunpack.c.l.b16 %v30
  %v70 = vunpack.c.l.b16 %v31
  %v71 = vpack.c.b16 %v56, %v55
  %v72 = vpack.c.b16 %v58, %v57
  %v73 = vpack.c.b16 %v60, %v59
  %v74 = vpack.c.b16 %v62, %v61
  %v75 = vpack.c.b16 %v64, %v63
  %v76 = vpack.c.b16 %v66, %v65
  %v77 = vpack.c.b16 %v68, %v67
  %v78 = vpack.c.b16 %v70, %v69
  %87 = vmatprep.subr.bf16.mxu0 0
  %88 = vmatpush1.bf16.msra.mxu0 %v78
  %89 = vmatprep.subr.bf16.mxu0 0
  %90 = vmatpush1.bf16.msra.mxu0 %v77
  %91 = vmatprep.subr.bf16.mxu0 0
  %92 = vmatpush1.bf16.msra.mxu0 %v76
  %93 = vmatprep.subr.bf16.mxu0 0
  %94 = vmatpush1.bf16.msra.mxu0 %v75
  %95 = vmatprep.subr.bf16.mxu0 0
  %96 = vmatpush1.bf16.msra.mxu0 %v74
  %97 = vmatprep.subr.bf16.mxu0 0
  %98 = vmatpush1.bf16.msra.mxu0 %v73
  %99 = vmatprep.subr.bf16.mxu0 0
  %100 = vmatpush1.bf16.msra.mxu0 %v72
  %101 = vmatprep.subr.bf16.mxu0 0
  %102 = vmatpush1.bf16.msra.mxu0 %v71
  %103 = vmatprep.subr.bf16.mxu0 0
  %104 = vmatpush2.bf16.msra.mxu0 0
  %105 = vmatprep.subr.bf16.mxu0 0
  %106 = vmatpush2.bf16.msra.mxu0 0
  %107 = vmatprep.subr.bf16.mxu0 0
  %108 = vmatpush2.bf16.msra.mxu0 0
  %109 = vmatprep.subr.bf16.mxu0 0
  %110 = vmatpush2.bf16.msra.mxu0 0
  %111 = vmatprep.subr.bf16.mxu0 0
  %112 = vmatpush2.bf16.msra.mxu0 0
  %113 = vmatprep.subr.bf16.mxu0 0
  %114 = vmatpush2.bf16.msra.mxu0 0
  %115 = vmatprep.subr.bf16.mxu0 0
  %116 = vmatpush2.bf16.msra.mxu0 0
  %117 = vmatprep.subr.bf16.mxu0 0
  %118 = vmatpush2.bf16.msra.mxu0 0
  %119 = vmatprep.mubr.bf16.mxu0 0
  %120 = vmatmul.mubr.bf16.gmra.mxu0 %v15
  %v121 = vpop.f32.mrf.mxu0
  %v122 = vadd.f32 %v37, %v121
  %v123 = vpop.f32.mrf.mxu0
  %v124 = vpop.f32.mrf.mxu0
  %v125 = vpop.f32.mrf.mxu0
  %126 = vdwg.mxu0
  %v127 = vtanh.pop %v122
  %128 = vst [vmem:[%s3] sm:$0x3f] %v127
  // Predicated region
  $region14: #{bert_parts_forward.8} parent=0 // pred_check
    _
  $region15: #{bert_parts_forward.8} parent=0 // pred_check_branch
    %130 = sbr.rel (0) target = $region17
  $region16: #{bert_parts_forward.8} parent=0 // pred_region
    _
  $region17: #{bert_parts_forward.8} parent=0 // pred_fallthru
    _
  // Predicated region
  $region18: #{bert_parts_forward.8} parent=0 // pred_check
    _
  $region19: #{bert_parts_forward.8} parent=0 // pred_check_branch
    %132 = sbr.rel (0) target = $region21
  $region20: #{bert_parts_forward.8} parent=0 // pred_region
    _
  $region21: #{bert_parts_forward.8} parent=0 // pred_fallthru
    _

// kernel: bert_parts_forward.6
$region0: #{bert_parts_forward.6}
  #allocation0 [shape = 'u32[]', space=smem, size = 0x4, offset = 0x4, fixed_abs, tag = 'smem constant byte address 0x4 - core index']
  #allocation1 [shape = 'u32[144,128]{1,0:T(1,128)}', space=vmem, size = 0x12000, scoped, tag = 'internal scratch']
  %s0 = inlined_call_operand.vmem [shape: bf16[6,16,128], index: 0, kind: input, shape index: {}]
  %s1 = inlined_call_operand.vmem [shape: f32[6,1,16], index: 1, kind: input, shape index: {}]
  %s2 = inlined_call_operand.vmem [shape: bf16[128,384], index: 2, kind: input, shape index: {}]
  %s3 = inlined_call_operand.vmem [shape: f32[1,384], index: 3, kind: input, shape index: {}]
  %s4 = inlined_call_operand.vmem [shape: bf16[128,128], index: 4, kind: input, shape index: {}]
  %s5 = inlined_call_operand.vmem [shape: f32[1,128], index: 5, kind: input, shape index: {}]
  %s6 = inlined_call_operand.vmem [shape: f32[1,128], index: 6, kind: input, shape index: {}]
  %s7 = inlined_call_operand.vmem [shape: f32[1,128], index: 7, kind: input, shape index: {}]
  %s8 = inlined_call_operand.vmem [shape: bf16[128,256], index: 8, kind: input, shape index: {}]
  %s9 = inlined_call_operand.vmem [shape: f32[1,256], index: 9, kind: input, shape index: {}]
  %s10 = inlined_call_operand.vmem [shape: bf16[256,128], index: 10, kind: input, shape index: {}]
  %s11 = inlined_call_operand.vmem [shape: f32[1,128], index: 11, kind: input, shape index: {}]
  %s12 = inlined_call_operand.vmem [shape: f32[1,128], index: 12, kind: input, shape index: {}]
  %s13 = inlined_call_operand.vmem [shape: f32[1,128], index: 13, kind: input, shape index: {}]
  %s14 = inlined_call_operand.vmem [shape: bf16[6,16,128], index: 14, kind: output, shape index: {}]
  %s15 = sld [smem:[#allocation0]]
  $region89: #{bert_parts_forward.6} parent=0
    _
  %s17 = ssub.s32 1, %s15
  %s18 = scalar_select 0, %s17, %s15
  loop: start=0, step=1, limit=8
  $region2: #{bert_parts_forward.6} parent=0 // loop_pre_header
    _
  $region3: #{bert_parts_forward.6} parent=0 // loop_header
    %s20 = sphi 0, %s24
    %p21 = scmp.ge.s32.totalorder %s20, 8
    %s30 = sphi 0, %s32
    %s33 = sphi 0, %s30
    %s34 = sphi 0, %s33
    %s50 = sphi 0, %s34
    %s56 = sphi 0, %s58
    %s59 = sphi 0, %s56
    %s60 = sphi 0, %s59
    %s76 = sphi 0, %s60
    %s80 = sphi 0, %s80
    %s82 = sphi 0, %s80
    %s83 = sphi 0, %s82
    %s97 = sphi 0, %s83
    %s101 = sphi 0, %s101
    %s103 = sphi 0, %s101
    %s104 = sphi 0, %s103
    %s118 = sphi 0, %s104
    %s122 = sphi 0, %s122
    %s124 = sphi 0, %s122
    %s125 = sphi 0, %s124
    %s139 = sphi 0, %s125
    %s143 = sphi 0, %s143
    %s145 = sphi 0, %s143
    %s146 = sphi 0, %s145
    %s160 = sphi 0, %s146
    %s164 = sphi 0, %s164
    %s166 = sphi 0, %s164
    %s167 = sphi 0, %s166
    %s181 = sphi 0, %s167
    %s185 = sphi 0, %s185
    %s187 = sphi 0, %s185
    %s188 = sphi 0, %s187
    %s202 = sphi 0, %s188
    %s206 = sphi 0, %s206
    %s208 = sphi 0, %s206
    %s209 = sphi 0, %s208
    %s223 = sphi 0, %s209
    %s227 = sphi 0, %s227
    %s229 = sphi 0, %s227
    %s230 = sphi 0, %s229
    %s244 = sphi 0, %s230
    %s248 = sphi 0, %s248
    %s250 = sphi 0, %s248
    %s251 = sphi 0, %s250
    %s265 = sphi 0, %s251
    %s269 = sphi 0, %s269
    %s271 = sphi 0, %s269
    %s272 = sphi 0, %s271
    %s286 = sphi 0, %s272
    %s290 = sphi 0, %s290
    %s292 = sphi 0, %s290
    %s293 = sphi 0, %s292
    %s307 = sphi 0, %s293
    %s311 = sphi 0, %s311
    %s313 = sphi 0, %s311
    %s314 = sphi 0, %s313
    %s328 = sphi 0, %s314
    %s334 = sphi 0, %s336
    %s337 = sphi 0, %s334
    %s338 = sphi 0, %s337
    %s354 = sphi 0, %s338
  $region4: #{bert_parts_forward.6} parent=0 // loop_header_branch
    %23 = sbr.rel (%p21) target = $region8
  $region5: #{bert_parts_forward.6} parent=0 // loop_body
    %s25 = ssub.s32 %s20, 1
    %s26 = ssub.s32 %s20, 2
    %s27 = sadd.s32 %s20, 1
    %s28 = ssub.s32 %s20, %s27
    %p29 = scmp.eq.s32.totalorder %s28, 0
    %s31 = sadd.s32 %s30, 1
    %s32 = scalar_select %p29, %s30, %s31
    %p35 = pneg %p29
    %p36 = scmp.eq.s32.totalorder %s20, 5
    %p37 = por %p35, %p36
    %p38 = scmp.ne.s32.totalorder %s30, %s33
    %p39 = scmp.eq.s32.totalorder %s20, 0
    %p40 = por %p38, %p39
    %p41 = scmp.ne.s32.totalorder %s30, %s33
    %p42 = scmp.eq.s32.totalorder %s25, 5
    %p43 = por %p41, %p42
    %p44 = scmp.ne.s32.totalorder %s33, %s34
    %p45 = scmp.eq.s32.totalorder %s25, 0
    %p46 = por %p44, %p45
    %p47 = scmp.ne.s32.totalorder %s33, %s34
    %p48 = scmp.eq.s32.totalorder %s26, 5
    %p49 = por %p47, %p48
    %p51 = scmp.ne.s32.totalorder %s34, %s50
    %p52 = scmp.eq.s32.totalorder %s26, 0
    %p53 = por %p51, %p52
    %s54 = ssub.s32 %s20, %s27
    %p55 = scmp.eq.s32.totalorder %s54, 0
    %s57 = sadd.s32 %s56, 1
    %s58 = scalar_select %p55, %s56, %s57
    %p61 = pneg %p55
    %p62 = scmp.eq.s32.totalorder %s20, 5
    %p63 = por %p61, %p62
    %p64 = scmp.ne.s32.totalorder %s56, %s59
    %p65 = scmp.eq.s32.totalorder %s20, 0
    %p66 = por %p64, %p65
    %p67 = scmp.ne.s32.totalorder %s56, %s59
    %p68 = scmp.eq.s32.totalorder %s25, 5
    %p69 = por %p67, %p68
    %p70 = scmp.ne.s32.totalorder %s59, %s60
    %p71 = scmp.eq.s32.totalorder %s25, 0
    %p72 = por %p70, %p71
    %p73 = scmp.ne.s32.totalorder %s59, %s60
    %p74 = scmp.eq.s32.totalorder %s26, 5
    %p75 = por %p73, %p74
    %p77 = scmp.ne.s32.totalorder %s60, %s76
    %p78 = scmp.eq.s32.totalorder %s26, 0
    %p79 = por %p77, %p78
    %s81 = sadd.s32 %s80, 1
    %p84 = scmp.eq.s32.totalorder %s20, 5
    %p85 = scmp.ne.s32.totalorder %s80, %s82
    %p86 = scmp.eq.s32.totalorder %s20, 0
    %p87 = por %p85, %p86
    %p88 = scmp.ne.s32.totalorder %s80, %s82
    %p89 = scmp.eq.s32.totalorder %s25, 5
    %p90 = por %p88, %p89
    %p91 = scmp.ne.s32.totalorder %s82, %s83
    %p92 = scmp.eq.s32.totalorder %s25, 0
    %p93 = por %p91, %p92
    %p94 = scmp.ne.s32.totalorder %s82, %s83
    %p95 = scmp.eq.s32.totalorder %s26, 5
    %p96 = por %p94, %p95
    %p98 = scmp.ne.s32.totalorder %s83, %s97
    %p99 = scmp.eq.s32.totalorder %s26, 0
    %p100 = por %p98, %p99
    %s102 = sadd.s32 %s101, 1
    %p105 = scmp.eq.s32.totalorder %s20, 5
    %p106 = scmp.ne.s32.totalorder %s101, %s103
    %p107 = scmp.eq.s32.totalorder %s20, 0
    %p108 = por %p106, %p107
    %p109 = scmp.ne.s32.totalorder %s101, %s103
    %p110 = scmp.eq.s32.totalorder %s25, 5
    %p111 = por %p109, %p110
    %p112 = scmp.ne.s32.totalorder %s103, %s104
    %p113 = scmp.eq.s32.totalorder %s25, 0
    %p114 = por %p112, %p113
    %p115 = scmp.ne.s32.totalorder %s103, %s104
    %p116 = scmp.eq.s32.totalorder %s26, 5
    %p117 = por %p115, %p116
    %p119 = scmp.ne.s32.totalorder %s104, %s118
    %p120 = scmp.eq.s32.totalorder %s26, 0
    %p121 = por %p119, %p120
    %s123 = sadd.s32 %s122, 1
    %p126 = scmp.eq.s32.totalorder %s20, 5
    %p127 = scmp.ne.s32.totalorder %s122, %s124
    %p128 = scmp.eq.s32.totalorder %s20, 0
    %p129 = por %p127, %p128
    %p130 = scmp.ne.s32.totalorder %s122, %s124
    %p131 = scmp.eq.s32.totalorder %s25, 5
    %p132 = por %p130, %p131
    %p133 = scmp.ne.s32.totalorder %s124, %s125
    %p134 = scmp.eq.s32.totalorder %s25, 0
    %p135 = por %p133, %p134
    %p136 = scmp.ne.s32.totalorder %s124, %s125
    %p137 = scmp.eq.s32.totalorder %s26, 5
    %p138 = por %p136, %p137
    %p140 = scmp.ne.s32.totalorder %s125, %s139
    %p141 = scmp.eq.s32.totalorder %s26, 0
    %p142 = por %p140, %p141
    %s144 = sadd.s32 %s143, 1
    %p147 = scmp.eq.s32.totalorder %s20, 5
    %p148 = scmp.ne.s32.totalorder %s143, %s145
    %p149 = scmp.eq.s32.totalorder %s20, 0
    %p150 = por %p148, %p149
    %p151 = scmp.ne.s32.totalorder %s143, %s145
    %p152 = scmp.eq.s32.totalorder %s25, 5
    %p153 = por %p151, %p152
    %p154 = scmp.ne.s32.totalorder %s145, %s146
    %p155 = scmp.eq.s32.totalorder %s25, 0
    %p156 = por %p154, %p155
    %p157 = scmp.ne.s32.totalorder %s145, %s146
    %p158 = scmp.eq.s32.totalorder %s26, 5
    %p159 = por %p157, %p158
    %p161 = scmp.ne.s32.totalorder %s146, %s160
    %p162 = scmp.eq.s32.totalorder %s26, 0
    %p163 = por %p161, %p162
    %s165 = sadd.s32 %s164, 1
    %p168 = scmp.eq.s32.totalorder %s20, 5
    %p169 = scmp.ne.s32.totalorder %s164, %s166
    %p170 = scmp.eq.s32.totalorder %s20, 0
    %p171 = por %p169, %p170
    %p172 = scmp.ne.s32.totalorder %s164, %s166
    %p173 = scmp.eq.s32.totalorder %s25, 5
    %p174 = por %p172, %p173
    %p175 = scmp.ne.s32.totalorder %s166, %s167
    %p176 = scmp.eq.s32.totalorder %s25, 0
    %p177 = por %p175, %p176
    %p178 = scmp.ne.s32.totalorder %s166, %s167
    %p179 = scmp.eq.s32.totalorder %s26, 5
    %p180 = por %p178, %p179
    %p182 = scmp.ne.s32.totalorder %s167, %s181
    %p183 = scmp.eq.s32.totalorder %s26, 0
    %p184 = por %p182, %p183
    %s186 = sadd.s32 %s185, 1
    %p189 = scmp.eq.s32.totalorder %s20, 5
    %p190 = scmp.ne.s32.totalorder %s185, %s187
    %p191 = scmp.eq.s32.totalorder %s20, 0
    %p192 = por %p190, %p191
    %p193 = scmp.ne.s32.totalorder %s185, %s187
    %p194 = scmp.eq.s32.totalorder %s25, 5
    %p195 = por %p193, %p194
    %p196 = scmp.ne.s32.totalorder %s187, %s188
    %p197 = scmp.eq.s32.totalorder %s25, 0
    %p198 = por %p196, %p197
    %p199 = scmp.ne.s32.totalorder %s187, %s188
    %p200 = scmp.eq.s32.totalorder %s26, 5
    %p201 = por %p199, %p200
    %p203 = scmp.ne.s32.totalorder %s188, %s202
    %p204 = scmp.eq.s32.totalorder %s26, 0
    %p205 = por %p203, %p204
    %s207 = sadd.s32 %s206, 1
    %p210 = scmp.eq.s32.totalorder %s20, 5
    %p211 = scmp.ne.s32.totalorder %s206, %s208
    %p212 = scmp.eq.s32.totalorder %s20, 0
    %p213 = por %p211, %p212
    %p214 = scmp.ne.s32.totalorder %s206, %s208
    %p215 = scmp.eq.s32.totalorder %s25, 5
    %p216 = por %p214, %p215
    %p217 = scmp.ne.s32.totalorder %s208, %s209
    %p218 = scmp.eq.s32.totalorder %s25, 0
    %p219 = por %p217, %p218
    %p220 = scmp.ne.s32.totalorder %s208, %s209
    %p221 = scmp.eq.s32.totalorder %s26, 5
    %p222 = por %p220, %p221
    %p224 = scmp.ne.s32.totalorder %s209, %s223
    %p225 = scmp.eq.s32.totalorder %s26, 0
    %p226 = por %p224, %p225
    %s228 = sadd.s32 %s227, 1
    %p231 = scmp.eq.s32.totalorder %s20, 5
    %p232 = scmp.ne.s32.totalorder %s227, %s229
    %p233 = scmp.eq.s32.totalorder %s20, 0
    %p234 = por %p232, %p233
    %p235 = scmp.ne.s32.totalorder %s227, %s229
    %p236 = scmp.eq.s32.totalorder %s25, 5
    %p237 = por %p235, %p236
    %p238 = scmp.ne.s32.totalorder %s229, %s230
    %p239 = scmp.eq.s32.totalorder %s25, 0
    %p240 = por %p238, %p239
    %p241 = scmp.ne.s32.totalorder %s229, %s230
    %p242 = scmp.eq.s32.totalorder %s26, 5
    %p243 = por %p241, %p242
    %p245 = scmp.ne.s32.totalorder %s230, %s244
    %p246 = scmp.eq.s32.totalorder %s26, 0
    %p247 = por %p245, %p246
    %s249 = sadd.s32 %s248, 1
    %p252 = scmp.eq.s32.totalorder %s20, 5
    %p253 = scmp.ne.s32.totalorder %s248, %s250
    %p254 = scmp.eq.s32.totalorder %s20, 0
    %p255 = por %p253, %p254
    %p256 = scmp.ne.s32.totalorder %s248, %s250
    %p257 = scmp.eq.s32.totalorder %s25, 5
    %p258 = por %p256, %p257
    %p259 = scmp.ne.s32.totalorder %s250, %s251
    %p260 = scmp.eq.s32.totalorder %s25, 0
    %p261 = por %p259, %p260
    %p262 = scmp.ne.s32.totalorder %s250, %s251
    %p263 = scmp.eq.s32.totalorder %s26, 5
    %p264 = por %p262, %p263
    %p266 = scmp.ne.s32.totalorder %s251, %s265
    %p267 = scmp.eq.s32.totalorder %s26, 0
    %p268 = por %p266, %p267
    %s270 = sadd.s32 %s269, 1
    %p273 = scmp.eq.s32.totalorder %s20, 5
    %p274 = scmp.ne.s32.totalorder %s269, %s271
    %p275 = scmp.eq.s32.totalorder %s20, 0
    %p276 = por %p274, %p275
    %p277 = scmp.ne.s32.totalorder %s269, %s271
    %p278 = scmp.eq.s32.totalorder %s25, 5
    %p279 = por %p277, %p278
    %p280 = scmp.ne.s32.totalorder %s271, %s272
    %p281 = scmp.eq.s32.totalorder %s25, 0
    %p282 = por %p280, %p281
    %p283 = scmp.ne.s32.totalorder %s271, %s272
    %p284 = scmp.eq.s32.totalorder %s26, 5
    %p285 = por %p283, %p284
    %p287 = scmp.ne.s32.totalorder %s272, %s286
    %p288 = scmp.eq.s32.totalorder %s26, 0
    %p289 = por %p287, %p288
    %s291 = sadd.s32 %s290, 1
    %p294 = scmp.eq.s32.totalorder %s20, 5
    %p295 = scmp.ne.s32.totalorder %s290, %s292
    %p296 = scmp.eq.s32.totalorder %s20, 0
    %p297 = por %p295, %p296
    %p298 = scmp.ne.s32.totalorder %s290, %s292
    %p299 = scmp.eq.s32.totalorder %s25, 5
    %p300 = por %p298, %p299
    %p301 = scmp.ne.s32.totalorder %s292, %s293
    %p302 = scmp.eq.s32.totalorder %s25, 0
    %p303 = por %p301, %p302
    %p304 = scmp.ne.s32.totalorder %s292, %s293
    %p305 = scmp.eq.s32.totalorder %s26, 5
    %p306 = por %p304, %p305
    %p308 = scmp.ne.s32.totalorder %s293, %s307
    %p309 = scmp.eq.s32.totalorder %s26, 0
    %p310 = por %p308, %p309
    %s312 = sadd.s32 %s311, 1
    %p315 = scmp.eq.s32.totalorder %s20, 5
    %p316 = scmp.ne.s32.totalorder %s311, %s313
    %p317 = scmp.eq.s32.totalorder %s20, 0
    %p318 = por %p316, %p317
    %p319 = scmp.ne.s32.totalorder %s311, %s313
    %p320 = scmp.eq.s32.totalorder %s25, 5
    %p321 = por %p319, %p320
    %p322 = scmp.ne.s32.totalorder %s313, %s314
    %p323 = scmp.eq.s32.totalorder %s25, 0
    %p324 = por %p322, %p323
    %p325 = scmp.ne.s32.totalorder %s313, %s314
    %p326 = scmp.eq.s32.totalorder %s26, 5
    %p327 = por %p325, %p326
    %p329 = scmp.ne.s32.totalorder %s314, %s328
    %p330 = scmp.eq.s32.totalorder %s26, 0
    %p331 = por %p329, %p330
    %s332 = ssub.s32 %s20, %s27
    %p333 = scmp.eq.s32.totalorder %s332, 0
    %s335 = sadd.s32 %s334, 1
    %s336 = scalar_select %p333, %s334, %s335
    %p339 = pneg %p333
    %p340 = scmp.eq.s32.totalorder %s20, 5
    %p341 = por %p339, %p340
    %p342 = scmp.ne.s32.totalorder %s334, %s337
    %p343 = scmp.eq.s32.totalorder %s20, 0
    %p344 = por %p342, %p343
    %p345 = scmp.ne.s32.totalorder %s334, %s337
    %p346 = scmp.eq.s32.totalorder %s25, 5
    %p347 = por %p345, %p346
    %p348 = scmp.ne.s32.totalorder %s337, %s338
    %p349 = scmp.eq.s32.totalorder %s25, 0
    %p350 = por %p348, %p349
    %p351 = scmp.ne.s32.totalorder %s337, %s338
    %p352 = scmp.eq.s32.totalorder %s26, 5
    %p353 = por %p351, %p352
    %p355 = scmp.ne.s32.totalorder %s338, %s354
    %p356 = scmp.eq.s32.totalorder %s26, 0
    %p357 = por %p355, %p356
    %p358 = scmp.le.s32.totalorder 1, %s20
    %p359 = scmp.lt.s32.totalorder %s20, 7
    %p360 = pnand %p358, %p359
    %p361 = pneg %p360
    // Predicated region
    $region9: #{bert_parts_forward.6} parent=5 // pred_check
      _
    $region10: #{bert_parts_forward.6} parent=5 // pred_check_branch
      %363 = sbr.rel (%p360) target = $region12
    $region11: #{bert_parts_forward.6} parent=5 // pred_region
      %s364 = ssub.s32 %s20, 1
      // Predicated region
      $region13: #{bert_parts_forward.6} parent=11 // pred_check
        %p365 = pneg %p93
      $region14: #{bert_parts_forward.6} parent=11 // pred_check_branch
        %367 = sbr.rel (%p365) target = $region16
      $region15: #{bert_parts_forward.6} parent=11 // pred_region
        _
      $region16: #{bert_parts_forward.6} parent=11 // pred_fallthru
        _
      // Predicated region
      $region17: #{bert_parts_forward.6} parent=11 // pred_check
        %p368 = pneg %p114
      $region18: #{bert_parts_forward.6} parent=11 // pred_check_branch
        %370 = sbr.rel (%p368) target = $region20
      $region19: #{bert_parts_forward.6} parent=11 // pred_region
        _
      $region20: #{bert_parts_forward.6} parent=11 // pred_fallthru
        _
      // Predicated region
      $region21: #{bert_parts_forward.6} parent=11 // pred_check
        %p371 = pneg %p135
      $region22: #{bert_parts_forward.6} parent=11 // pred_check_branch
        %373 = sbr.rel (%p371) target = $region24
      $region23: #{bert_parts_forward.6} parent=11 // pred_region
        _
      $region24: #{bert_parts_forward.6} parent=11 // pred_fallthru
        _
      // Predicated region
      $region25: #{bert_parts_forward.6} parent=11 // pred_check
        %p374 = pneg %p156
      $region26: #{bert_parts_forward.6} parent=11 // pred_check_branch
        %376 = sbr.rel (%p374) target = $region28
      $region27: #{bert_parts_forward.6} parent=11 // pred_region
        _
      $region28: #{bert_parts_forward.6} parent=11 // pred_fallthru
        _
      // Predicated region
      $region29: #{bert_parts_forward.6} parent=11 // pred_check
        %p377 = pneg %p177
      $region30: #{bert_parts_forward.6} parent=11 // pred_check_branch
        %379 = sbr.rel (%p377) target = $region32
      $region31: #{bert_parts_forward.6} parent=11 // pred_region
        _
      $region32: #{bert_parts_forward.6} parent=11 // pred_fallthru
        _
      // Predicated region
      $region33: #{bert_parts_forward.6} parent=11 // pred_check
        %p380 = pneg %p198
      $region34: #{bert_parts_forward.6} parent=11 // pred_check_branch
        %382 = sbr.rel (%p380) target = $region36
      $region35: #{bert_parts_forward.6} parent=11 // pred_region
        _
      $region36: #{bert_parts_forward.6} parent=11 // pred_fallthru
        _
      // Predicated region
      $region37: #{bert_parts_forward.6} parent=11 // pred_check
        %p383 = pneg %p219
      $region38: #{bert_parts_forward.6} parent=11 // pred_check_branch
        %385 = sbr.rel (%p383) target = $region40
      $region39: #{bert_parts_forward.6} parent=11 // pred_region
        _
      $region40: #{bert_parts_forward.6} parent=11 // pred_fallthru
        _
      // Predicated region
      $region41: #{bert_parts_forward.6} parent=11 // pred_check
        %p386 = pneg %p240
      $region42: #{bert_parts_forward.6} parent=11 // pred_check_branch
        %388 = sbr.rel (%p386) target = $region44
      $region43: #{bert_parts_forward.6} parent=11 // pred_region
        _
      $region44: #{bert_parts_forward.6} parent=11 // pred_fallthru
        _
      // Predicated region
      $region45: #{bert_parts_forward.6} parent=11 // pred_check
        %p389 = pneg %p261
      $region46: #{bert_parts_forward.6} parent=11 // pred_check_branch
        %391 = sbr.rel (%p389) target = $region48
      $region47: #{bert_parts_forward.6} parent=11 // pred_region
        _
      $region48: #{bert_parts_forward.6} parent=11 // pred_fallthru
        _
      // Predicated region
      $region49: #{bert_parts_forward.6} parent=11 // pred_check
        %p392 = pneg %p282
      $region50: #{bert_parts_forward.6} parent=11 // pred_check_branch
        %394 = sbr.rel (%p392) target = $region52
      $region51: #{bert_parts_forward.6} parent=11 // pred_region
        _
      $region52: #{bert_parts_forward.6} parent=11 // pred_fallthru
        _
      // Predicated region
      $region53: #{bert_parts_forward.6} parent=11 // pred_check
        %p395 = pneg %p303
      $region54: #{bert_parts_forward.6} parent=11 // pred_check_branch
        %397 = sbr.rel (%p395) target = $region56
      $region55: #{bert_parts_forward.6} parent=11 // pred_region
        _
      $region56: #{bert_parts_forward.6} parent=11 // pred_fallthru
        _
      // Predicated region
      $region57: #{bert_parts_forward.6} parent=11 // pred_check
        %p398 = pneg %p324
      $region58: #{bert_parts_forward.6} parent=11 // pred_check_branch
        %400 = sbr.rel (%p398) target = $region60
      $region59: #{bert_parts_forward.6} parent=11 // pred_region
        _
      $region60: #{bert_parts_forward.6} parent=11 // pred_fallthru
        _
    $region12: #{bert_parts_forward.6} parent=5 // pred_fallthru
      _
    %p401 = scmp.lt.s32.totalorder %s20, 6
    // Predicated region
    $region61: #{bert_parts_forward.6} parent=5 // pred_check
      %p402 = pneg %p401
    $region62: #{bert_parts_forward.6} parent=5 // pred_check_branch
      %404 = sbr.rel (%p402) target = $region64
    $region63: #{bert_parts_forward.6} parent=5 // pred_region
      // Predicated region
      $region65: #{bert_parts_forward.6} parent=63 // pred_check
        %p405 = pneg %p40
      $region66: #{bert_parts_forward.6} parent=63 // pred_check_branch
        %407 = sbr.rel (%p405) target = $region68
      $region67: #{bert_parts_forward.6} parent=63 // pred_region
        %p408 = scmp.lt.s32.totalorder %s20, 5
        %s409 = scalar_select %p408, %s20, 5
        %s410 = smul.addr %s409, 2
        %s411 = smul.addr %s410, 4
        %s412 = scalar_lea.vmem %s0, %s411
      $region68: #{bert_parts_forward.6} parent=63 // pred_fallthru
        _
      // Predicated region
      $region69: #{bert_parts_forward.6} parent=63 // pred_check
        %p413 = pneg %p66
      $region70: #{bert_parts_forward.6} parent=63 // pred_check_branch
        %415 = sbr.rel (%p413) target = $region72
      $region71: #{bert_parts_forward.6} parent=63 // pred_region
        %p416 = scmp.lt.s32.totalorder %s20, 5
        %s417 = scalar_select %p416, %s20, 5
        %s418 = scalar_lea.vmem %s1, %s417
      $region72: #{bert_parts_forward.6} parent=63 // pred_fallthru
        _
    $region64: #{bert_parts_forward.6} parent=5 // pred_fallthru
      _
    %p419 = scmp.le.s32.totalorder 1, %s20
    %p420 = scmp.lt.s32.totalorder %s20, 7
    %p421 = pnand %p419, %p420
    %p422 = pneg %p421
    // Predicated region
    $region73: #{bert_parts_forward.6} parent=5 // pred_check
      _
    $region74: #{bert_parts_forward.6} parent=5 // pred_check_branch
      %424 = sbr.rel (%p421) target = $region76
    $region75: #{bert_parts_forward.6} parent=5 // pred_region
      %s425 = ssub.s32 %s20, 1
      %p426 = scmp.lt.s32.totalorder %s25, 5
      %s427 = scalar_select %p426, %s25, 5
      %s428 = smul.addr %s427, 2
      %s429 = smul.addr %s428, 4
      %s430 = scalar_lea.vmem %s0, %s429
      %p431 = pneg %p46
      %p432 = pneg %p43
      %p433 = scmp.lt.s32.totalorder %s25, 5
      %s434 = scalar_select %p433, %s25, 5
      %s435 = scalar_lea.vmem %s1, %s434
      %p436 = pneg %p72
      %p437 = pneg %p69
      %p438 = pneg %p93
      %p439 = pneg %p90
      %p440 = pneg %p114
      %p441 = pneg %p111
      %p442 = pneg %p135
      %p443 = pneg %p132
      %p444 = pneg %p156
      %p445 = pneg %p153
      %p446 = pneg %p177
      %p447 = pneg %p174
      %p448 = pneg %p198
      %p449 = pneg %p195
      %p450 = pneg %p219
      %p451 = pneg %p216
      %p452 = pneg %p240
      %p453 = pneg %p237
      %p454 = pneg %p261
      %p455 = pneg %p258
      %p456 = pneg %p282
      %p457 = pneg %p279
      %p458 = pneg %p303
      %p459 = pneg %p300
      %p460 = pneg %p324
      %p461 = pneg %p321
      %p462 = pneg %p350
      %p463 = pneg %p347
      %p464 = scmp.lt.s32.totalorder %s25, 5
      %s465 = scalar_select %p464, %s25, 5
      %s466 = smul.addr %s465, 2
      %s467 = smul.addr %s466, 4
      %s468 = scalar_lea.vmem %s14, %s467
      %p469 = scmp.lt.s32.totalorder %s25, 5
      %s470 = scalar_select %p469, %s25, 5
      %s471 = smul.addr %s470, 2
      %s472 = smul.addr %s471, 4
      %s473 = scalar_lea.vmem %s0, %s472
      %p474 = scmp.lt.s32.totalorder %s25, 5
      %s475 = scalar_select %p474, %s25, 5
      %s476 = scalar_lea.vmem %s1, %s475
      %p477 = scmp.lt.s32.totalorder %s25, 5
      %s478 = scalar_select %p477, %s25, 5
      %s479 = smul.addr %s478, 2
      %s480 = smul.addr %s479, 4
      %s481 = scalar_lea.vmem %s14, %s480
      %v483 = vld [vmem:[%s473] sm:$0xf]
      %v484 = vld [vmem:[%s473 + $0x4] sm:$0xf]
      %v485 = vld [vmem:[%s476] sm:$0x1]
      %v486 = vld [vmem:[%s2] sm:$0xff]
      %v487 = vld [vmem:[%s2 + $0x8] sm:$0xf]
      %v488 = vld [vmem:[%s2 + $0xc] sm:$0xff]
      %v489 = vld [vmem:[%s2 + $0x14] sm:$0xf]
      %v490 = vld [vmem:[%s2 + $0x18] sm:$0xff]
      %v491 = vld [vmem:[%s2 + $0x20] sm:$0xf]
      %v492 = vld [vmem:[%s2 + $0x24] sm:$0xff]
      %v493 = vld [vmem:[%s2 + $0x2c] sm:$0xf]
      %v494 = vld [vmem:[%s2 + $0x30] sm:$0xff]
      %v495 = vld [vmem:[%s2 + $0x38] sm:$0xf]
      %v496 = vld [vmem:[%s2 + $0x3c] sm:$0xff]
      %v497 = vld [vmem:[%s2 + $0x44] sm:$0xf]
      %v498 = vld [vmem:[%s2 + $0x48] sm:$0xff]
      %v499 = vld [vmem:[%s2 + $0x50] sm:$0xf]
      %v500 = vld [vmem:[%s2 + $0x54] sm:$0xff]
      %v501 = vld [vmem:[%s2 + $0x5c] sm:$0xf]
      %v502 = vld [vmem:[%s2 + $0x60] sm:$0xff]
      %v503 = vld [vmem:[%s2 + $0x68] sm:$0xf]
      %v504 = vld [vmem:[%s2 + $0x6c] sm:$0xff]
      %v505 = vld [vmem:[%s2 + $0x74] sm:$0xf]
      %v506 = vld [vmem:[%s2 + $0x78] sm:$0xff]
      %v507 = vld [vmem:[%s2 + $0x80] sm:$0xf]
      %v508 = vld [vmem:[%s2 + $0x84] sm:$0xff]
      %v509 = vld [vmem:[%s2 + $0x8c] sm:$0xf]
      %v510 = vld [vmem:[%s2 + $0x90] sm:$0xff]
      %v511 = vld [vmem:[%s2 + $0x98] sm:$0xf]
      %v512 = vld [vmem:[%s2 + $0x9c] sm:$0xff]
      %v513 = vld [vmem:[%s2 + $0xa4] sm:$0xf]
      %v514 = vld [vmem:[%s2 + $0xa8] sm:$0xff]
      %v515 = vld [vmem:[%s2 + $0xb0] sm:$0xf]
      %v516 = vld [vmem:[%s2 + $0xb4] sm:$0xff]
      %v517 = vld [vmem:[%s2 + $0xbc] sm:$0xf]
      %v518 = vld [vmem:[%s3] sm:$0x7]
      %v520 = vlaneseq
      %v521 = vshrl.u32 %v520, 7
      %v522 = vsub.s32 0, %v521
      %v523 = vrot.slane %v518, %v522
      %v524 = vlaneseq
      %v525 = vshrl.u32 %v524, 7
      %v526 = vsub.s32 1, %v525
      %v527 = vrot.slane %v518, %v526
      %v528 = vlaneseq
      %v529 = vshrl.u32 %v528, 7
      %v530 = vsub.s32 2, %v529
      %v531 = vrot.slane %v518, %v530
      %v537 = vunpack.c.l.b16 %v483
      %v538 = vunpack.c.l.b16 %v484
      %v539 = vpack.c.b16 %v538, %v537
      %v573 = vunpack.c.l.b16 %v486
      %v574 = vunpack.c.h.b16 %v486
      %v575 = vunpack.c.l.b16 %v487
      %v576 = vunpack.c.l.b16 %v488
      %v577 = vunpack.c.h.b16 %v488
      %v578 = vunpack.c.l.b16 %v489
      %v579 = vunpack.c.l.b16 %v490
      %v580 = vunpack.c.h.b16 %v490
      %v581 = vunpack.c.l.b16 %v491
      %v582 = vunpack.c.l.b16 %v492
      %v583 = vunpack.c.h.b16 %v492
      %v584 = vunpack.c.l.b16 %v493
      %v585 = vunpack.c.l.b16 %v494
      %v586 = vunpack.c.h.b16 %v494
      %v587 = vunpack.c.l.b16 %v495
      %v588 = vunpack.c.l.b16 %v496
      %v589 = vunpack.c.h.b16 %v496
      %v590 = vunpack.c.l.b16 %v497
      %v591 = vunpack.c.l.b16 %v498
      %v592 = vunpack.c.h.b16 %v498
      %v593 = vunpack.c.l.b16 %v499
      %v594 = vunpack.c.l.b16 %v500
      %v595 = vunpack.c.h.b16 %v500
      %v596 = vunpack.c.l.b16 %v501
      %v597 = vunpack.c.l.b16 %v502
      %v598 = vunpack.c.h.b16 %v502
      %v599 = vunpack.c.l.b16 %v503
      %v600 = vunpack.c.l.b16 %v504
      %v601 = vunpack.c.h.b16 %v504
      %v602 = vunpack.c.l.b16 %v505
      %v603 = vunpack.c.l.b16 %v506
      %v604 = vunpack.c.h.b16 %v506
      %v605 = vunpack.c.l.b16 %v507
      %v606 = vunpack.c.l.b16 %v508
      %v607 = vunpack.c.h.b16 %v508
      %v608 = vunpack.c.l.b16 %v509
      %v609 = vunpack.c.l.b16 %v510
      %v610 = vunpack.c.h.b16 %v510
      %v611 = vunpack.c.l.b16 %v511
      %v612 = vunpack.c.l.b16 %v512
      %v613 = vunpack.c.h.b16 %v512
      %v614 = vunpack.c.l.b16 %v513
      %v615 = vunpack.c.l.b16 %v514
      %v616 = vunpack.c.h.b16 %v514
      %v617 = vunpack.c.l.b16 %v515
      %v618 = vunpack.c.l.b16 %v516
      %v619 = vunpack.c.h.b16 %v516
      %v620 = vunpack.c.l.b16 %v517
      %v621 = vpack.c.b16 %v576, %v573
      %v622 = vpack.c.b16 %v577, %v574
      %v623 = vpack.c.b16 %v578, %v575
      %v624 = vpack.c.b16 %v582, %v579
      %v625 = vpack.c.b16 %v583, %v580
      %v626 = vpack.c.b16 %v584, %v581
      %v627 = vpack.c.b16 %v588, %v585
      %v628 = vpack.c.b16 %v589, %v586
      %v629 = vpack.c.b16 %v590, %v587
      %v630 = vpack.c.b16 %v594, %v591
      %v631 = vpack.c.b16 %v595, %v592
      %v632 = vpack.c.b16 %v596, %v593
      %v633 = vpack.c.b16 %v600, %v597
      %v634 = vpack.c.b16 %v601, %v598
      %v635 = vpack.c.b16 %v602, %v599
      %v636 = vpack.c.b16 %v606, %v603
      %v637 = vpack.c.b16 %v607, %v604
      %v638 = vpack.c.b16 %v608, %v605
      %v639 = vpack.c.b16 %v612, %v609
      %v640 = vpack.c.b16 %v613, %v610
      %v641 = vpack.c.b16 %v614, %v611
      %v642 = vpack.c.b16 %v618, %v615
      %v643 = vpack.c.b16 %v619, %v616
      %v644 = vpack.c.b16 %v620, %v617
      %669 = vmatprep.subr.bf16.mxu0 %v643
      %670 = vmatpush1.bf16.msra.mxu0 %v642
      %671 = vmatprep.subr.bf16.mxu0 %v640
      %672 = vmatpush1.bf16.msra.mxu0 %v639
      %673 = vmatprep.subr.bf16.mxu0 %v637
      %674 = vmatpush1.bf16.msra.mxu0 %v636
      %675 = vmatprep.subr.bf16.mxu0 %v634
      %676 = vmatpush1.bf16.msra.mxu0 %v633
      %677 = vmatprep.subr.bf16.mxu0 %v631
      %678 = vmatpush1.bf16.msra.mxu0 %v630
      %679 = vmatprep.subr.bf16.mxu0 %v628
      %680 = vmatpush1.bf16.msra.mxu0 %v627
      %681 = vmatprep.subr.bf16.mxu0 %v625
      %682 = vmatpush1.bf16.msra.mxu0 %v624
      %683 = vmatprep.subr.bf16.mxu0 %v622
      %684 = vmatpush1.bf16.msra.mxu0 %v621
      %685 = vmatprep.subr.bf16.mxu0 0
      %686 = vmatpush2.bf16.msra.mxu0 0
      %687 = vmatprep.subr.bf16.mxu0 0
      %688 = vmatpush2.bf16.msra.mxu0 0
      %689 = vmatprep.subr.bf16.mxu0 0
      %690 = vmatpush2.bf16.msra.mxu0 0
      %691 = vmatprep.subr.bf16.mxu0 0
      %692 = vmatpush2.bf16.msra.mxu0 0
      %693 = vmatprep.subr.bf16.mxu0 0
      %694 = vmatpush2.bf16.msra.mxu0 0
      %695 = vmatprep.subr.bf16.mxu0 0
      %696 = vmatpush2.bf16.msra.mxu0 0
      %697 = vmatprep.subr.bf16.mxu0 0
      %698 = vmatpush2.bf16.msra.mxu0 0
      %699 = vmatprep.subr.bf16.mxu0 0
      %700 = vmatpush2.bf16.msra.mxu0 0
      %701 = vmatprep.mubr.bf16.mxu0 0
      %702 = vmatmul.mubr.bf16.gmra.mxu0 %v539
      %v703 = vpop.f32.mrf.mxu0
      %v704 = vadd.f32 %v523, %v703
      %v705 = vpop.f32.mrf.mxu0
      %v706 = vadd.f32 %v527, %v705
      %v707 = vpop.f32.mrf.mxu0
      %v708 = vadd.f32 %v523, %v707
      %v709 = vpop.f32.mrf.mxu0
      %v710 = vadd.f32 %v527, %v709
      %711 = vdwg.mxu0
      %712 = vmatprep.subr.bf16.mxu0 0
      %713 = vmatpush1.bf16.msra.mxu0 %v644
      %714 = vmatprep.subr.bf16.mxu0 0
      %715 = vmatpush1.bf16.msra.mxu0 %v641
      %716 = vmatprep.subr.bf16.mxu0 0
      %717 = vmatpush1.bf16.msra.mxu0 %v638
      %718 = vmatprep.subr.bf16.mxu0 0
      %719 = vmatpush1.bf16.msra.mxu0 %v635
      %720 = vmatprep.subr.bf16.mxu0 0
      %721 = vmatpush1.bf16.msra.mxu0 %v632
      %722 = vmatprep.subr.bf16.mxu0 0
      %723 = vmatpush1.bf16.msra.mxu0 %v629
      %724 = vmatprep.subr.bf16.mxu0 0
      %725 = vmatpush1.bf16.msra.mxu0 %v626
      %726 = vmatprep.subr.bf16.mxu0 0
      %727 = vmatpush1.bf16.msra.mxu0 %v623
      %728 = vmatprep.subr.bf16.mxu0 0
      %729 = vmatpush2.bf16.msra.mxu0 0
      %730 = vmatprep.subr.bf16.mxu0 0
      %731 = vmatpush2.bf16.msra.mxu0 0
      %732 = vmatprep.subr.bf16.mxu0 0
      %733 = vmatpush2.bf16.msra.mxu0 0
      %734 = vmatprep.subr.bf16.mxu0 0
      %735 = vmatpush2.bf16.msra.mxu0 0
      %736 = vmatprep.subr.bf16.mxu0 0
      %737 = vmatpush2.bf16.msra.mxu0 0
      %738 = vmatprep.subr.bf16.mxu0 0
      %739 = vmatpush2.bf16.msra.mxu0 0
      %740 = vmatprep.subr.bf16.mxu0 0
      %741 = vmatpush2.bf16.msra.mxu0 0
      %742 = vmatprep.subr.bf16.mxu0 0
      %743 = vmatpush2.bf16.msra.mxu0 0
      %744 = vmatprep.mubr.bf16.mxu0 0
      %745 = vmatmul.mubr.bf16.gmra.mxu0 %v539
      %v746 = vpop.f32.mrf.mxu0
      %v747 = vadd.f32 %v531, %v746
      %v748 = vpop.f32.mrf.mxu0
      %v749 = vpop.f32.mrf.mxu0
      %v750 = vadd.f32 %v531, %v749
      %v751 = vpop.f32.mrf.mxu0
      %752 = vdwg.mxu0
      %v753 = vpack.c.bf16 %v708, %v704
      %v754 = vpack.c.bf16 %v710, %v706
      %v755 = vpack.c.bf16 %v750, %v747
      %v757 = vlaneseq
      %v758 = vshrl.u32 %v757, 7
      %v759 = vsub.s32 0, %v758
      %v760 = vrot.slane %v485, %v759
      %vm762 = vcmask 523264
      %v764 = vsel %vm762, %v753, 0
      %v767 = vsel %vm762, %v754, 0
      %769 = vmatprep.subr.bf16.mxu0 0
      %770 = vmatpush1.bf16.xpose.msra.mxu0 0
      %771 = vmatprep.subr.bf16.mxu0 0
      %772 = vmatpush1.bf16.xpose.msra.mxu0 0
      %773 = vmatprep.subr.bf16.mxu0 0
      %774 = vmatpush1.bf16.xpose.msra.mxu0 0
      %775 = vmatprep.subr.bf16.mxu0 0
      %776 = vmatpush1.bf16.xpose.msra.mxu0 0
      %777 = vmatprep.subr.bf16.mxu0 0
      %778 = vmatpush1.bf16.xpose.msra.mxu0 0
      %779 = vmatprep.subr.bf16.mxu0 0
      %780 = vmatpush1.bf16.xpose.msra.mxu0 0
      %781 = vmatprep.subr.bf16.mxu0 0
      %782 = vmatpush1.bf16.xpose.msra.mxu0 0
      %783 = vmatprep.subr.bf16.mxu0 0
      %784 = vmatpush1.bf16.xpose.msra.mxu0 %v767
      %785 = vmatprep.subr.bf16.mxu0 0
      %786 = vmatpush2.bf16.xpose.msra.mxu0 0
      %787 = vmatprep.subr.bf16.mxu0 0
      %788 = vmatpush2.bf16.xpose.msra.mxu0 0
      %789 = vmatprep.subr.bf16.mxu0 0
      %790 = vmatpush2.bf16.xpose.msra.mxu0 0
      %791 = vmatprep.subr.bf16.mxu0 0
      %792 = vmatpush2.bf16.xpose.msra.mxu0 0
      %793 = vmatprep.subr.bf16.mxu0 0
      %794 = vmatpush2.bf16.xpose.msra.mxu0 0
      %795 = vmatprep.subr.bf16.mxu0 0
      %796 = vmatpush2.bf16.xpose.msra.mxu0 0
      %797 = vmatprep.subr.bf16.mxu0 0
      %798 = vmatpush2.bf16.xpose.msra.mxu0 0
      %799 = vmatprep.subr.bf16.mxu0 0
      %800 = vmatpush2.bf16.xpose.msra.mxu0 0
      %801 = vmatprep.mubr.bf16.mxu0 0
      %802 = vmatmul.mubr.bf16.gmra.mxu0 %v764
      %v803 = vpop.f32.mrf.mxu0
      %v804 = vadd.f32 %v760, %v803
      %v805 = vpop.f32.mrf.mxu0
      %v806 = vpop.f32.mrf.mxu0
      %v807 = vadd.f32 %v760, %v806
      %v808 = vpop.f32.mrf.mxu0
      %809 = vdwg.mxu0
      %vm810 = vcmask 130048
      %v811 = vsel %vm810, %v804, -inf
      %812 = vmax.xlane.f32.xlu0 %v811
      %v813 = vpop.xlane.xlu0 %812
      %v814 = vsel %vm810, %v807, -inf
      %815 = vmax.xlane.f32.xlu0 %v814
      %v816 = vpop.xlane.xlu0 %815
      %v817 = vsub.f32 %v804, %v813
      %v818 = vsub.f32 %v807, %v816
      %v819 = vmul.f32 %v817, 1.442695
      %v820 = vpow.pop %v819
      %v821 = vmul.f32 %v818, 1.442695
      %v822 = vpow.pop %v821
      %v823 = vsel %vm810, %v820, 0.0
      %824 = vadd.xlane.f32.xlu0 %v823
      %v825 = vpop.xlane.xlu0 %824
      %v826 = vsel %vm810, %v822, 0.0
      %827 = vadd.xlane.f32.xlu0 %v826
      %v828 = vpop.xlane.xlu0 %827
      %v829 = vrcp.pop %v825
      %v830 = vrcp.pop %v828
      %v831 = vmul.f32 %v820, %v829
      %v832 = vmul.f32 %v822, %v830
      %v833 = vpack.c.bf16 %v832, %v831
      %v835 = vsel %vm810, %v833, 0
      %837 = vmatprep.subr.bf16.mxu0 0
      %838 = vmatpush1.bf16.msra.mxu0 0
      %839 = vmatprep.subr.bf16.mxu0 0
      %840 = vmatpush1.bf16.msra.mxu0 0
      %841 = vmatprep.subr.bf16.mxu0 0
      %842 = vmatpush1.bf16.msra.mxu0 0
      %843 = vmatprep.subr.bf16.mxu0 0
      %844 = vmatpush1.bf16.msra.mxu0 0
      %845 = vmatprep.subr.bf16.mxu0 0
      %846 = vmatpush1.bf16.msra.mxu0 0
      %847 = vmatprep.subr.bf16.mxu0 0
      %848 = vmatpush1.bf16.msra.mxu0 0
      %849 = vmatprep.subr.bf16.mxu0 0
      %850 = vmatpush1.bf16.msra.mxu0 0
      %851 = vmatprep.subr.bf16.mxu0 0
      %852 = vmatpush1.bf16.msra.mxu0 %v755
      %853 = vmatprep.subr.bf16.mxu0 0
      %854 = vmatpush2.bf16.msra.mxu0 0
      %855 = vmatprep.subr.bf16.mxu0 0
      %856 = vmatpush2.bf16.msra.mxu0 0
      %857 = vmatprep.subr.bf16.mxu0 0
      %858 = vmatpush2.bf16.msra.mxu0 0
      %859 = vmatprep.subr.bf16.mxu0 0
      %860 = vmatpush2.bf16.msra.mxu0 0
      %861 = vmatprep.subr.bf16.mxu0 0
      %862 = vmatpush2.bf16.msra.mxu0 0
      %863 = vmatprep.subr.bf16.mxu0 0
      %864 = vmatpush2.bf16.msra.mxu0 0
      %865 = vmatprep.subr.bf16.mxu0 0
      %866 = vmatpush2.bf16.msra.mxu0 0
      %867 = vmatprep.subr.bf16.mxu0 0
      %868 = vmatpush2.bf16.msra.mxu0 0
      %869 = vmatprep.mubr.bf16.mxu0 0
      %870 = vmatmul.mubr.bf16.gmra.mxu0 %v835
      %v871 = vpop.f32.mrf.mxu0
      %v872 = vadd.f32 0.0, %v871
      %v873 = vpop.f32.mrf.mxu0
      %v874 = vpop.f32.mrf.mxu0
      %v875 = vadd.f32 0.0, %v874
      %v876 = vpop.f32.mrf.mxu0
      %877 = vdwg.mxu0
      %879 = vrot.lane.b32.xlu0 %v753, 64
      %v880 = vpop.permute.xlu0 %879
      %882 = vrot.lane.b32.xlu0 %v754, 64
      %v883 = vpop.permute.xlu0 %882
      %v885 = vsel %vm762, %v880, 0
      %v888 = vsel %vm762, %v883, 0
      %890 = vmatprep.subr.bf16.mxu0 0
      %891 = vmatpush1.bf16.xpose.msra.mxu0 0
      %892 = vmatprep.subr.bf16.mxu0 0
      %893 = vmatpush1.bf16.xpose.msra.mxu0 0
      %894 = vmatprep.subr.bf16.mxu0 0
      %895 = vmatpush1.bf16.xpose.msra.mxu0 0
      %896 = vmatprep.subr.bf16.mxu0 0
      %897 = vmatpush1.bf16.xpose.msra.mxu0 0
      %898 = vmatprep.subr.bf16.mxu0 0
      %899 = vmatpush1.bf16.xpose.msra.mxu0 0
      %900 = vmatprep.subr.bf16.mxu0 0
      %901 = vmatpush1.bf16.xpose.msra.mxu0 0
      %902 = vmatprep.subr.bf16.mxu0 0
      %903 = vmatpush1.bf16.xpose.msra.mxu0 0
      %904 = vmatprep.subr.bf16.mxu0 0
      %905 = vmatpush1.bf16.xpose.msra.mxu0 %v888
      %906 = vmatprep.subr.bf16.mxu0 0
      %907 = vmatpush2.bf16.xpose.msra.mxu0 0
      %908 = vmatprep.subr.bf16.mxu0 0
      %909 = vmatpush2.bf16.xpose.msra.mxu0 0
      %910 = vmatprep.subr.bf16.mxu0 0
      %911 = vmatpush2.bf16.xpose.msra.mxu0 0
      %912 = vmatprep.subr.bf16.mxu0 0
      %913 = vmatpush2.bf16.xpose.msra.mxu0 0
      %914 = vmatprep.subr.bf16.mxu0 0
      %915 = vmatpush2.bf16.xpose.msra.mxu0 0
      %916 = vmatprep.subr.bf16.mxu0 0
      %917 = vmatpush2.bf16.xpose.msra.mxu0 0
      %918 = vmatprep.subr.bf16.mxu0 0
      %919 = vmatpush2.bf16.xpose.msra.mxu0 0
      %920 = vmatprep.subr.bf16.mxu0 0
      %921 = vmatpush2.bf16.xpose.msra.mxu0 0
      %922 = vmatprep.mubr.bf16.mxu0 0
      %923 = vmatmul.mubr.bf16.gmra.mxu0 %v885
      %v924 = vpop.f32.mrf.mxu0
      %v925 = vadd.f32 %v760, %v924
      %v926 = vpop.f32.mrf.mxu0
      %v927 = vpop.f32.mrf.mxu0
      %v928 = vadd.f32 %v760, %v927
      %v929 = vpop.f32.mrf.mxu0
      %930 = vdwg.mxu0
      %v931 = vsel %vm810, %v925, -inf
      %932 = vmax.xlane.f32.xlu0 %v931
      %v933 = vpop.xlane.xlu0 %932
      %v934 = vsel %vm810, %v928, -inf
      %935 = vmax.xlane.f32.xlu0 %v934
      %v936 = vpop.xlane.xlu0 %935
      %v937 = vsub.f32 %v925, %v933
      %v938 = vsub.f32 %v928, %v936
      %v939 = vmul.f32 %v937, 1.442695
      %v940 = vpow.pop %v939
      %v941 = vmul.f32 %v938, 1.442695
      %v942 = vpow.pop %v941
      %v943 = vsel %vm810, %v940, 0.0
      %944 = vadd.xlane.f32.xlu0 %v943
      %v945 = vpop.xlane.xlu0 %944
      %v946 = vsel %vm810, %v942, 0.0
      %947 = vadd.xlane.f32.xlu0 %v946
      %v948 = vpop.xlane.xlu0 %947
      %v949 = vrcp.pop %v945
      %v950 = vrcp.pop %v948
      %v951 = vmul.f32 %v940, %v949
      %v952 = vmul.f32 %v942, %v950
      %v953 = vpack.c.bf16 %v952, %v951
      %955 = vrot.lane.b32.xlu0 %v755, 64
      %v956 = vpop.permute.xlu0 %955
      %v959 = vsel %vm810, %v953, 0
      %961 = vmatprep.subr.bf16.mxu0 0
      %962 = vmatpush1.bf16.msra.mxu0 0
      %963 = vmatprep.subr.bf16.mxu0 0
      %964 = vmatpush1.bf16.msra.mxu0 0
      %965 = vmatprep.subr.bf16.mxu0 0
      %966 = vmatpush1.bf16.msra.mxu0 0
      %967 = vmatprep.subr.bf16.mxu0 0
      %968 = vmatpush1.bf16.msra.mxu0 0
      %969 = vmatprep.subr.bf16.mxu0 0
      %970 = vmatpush1.bf16.msra.mxu0 0
      %971 = vmatprep.subr.bf16.mxu0 0
      %972 = vmatpush1.bf16.msra.mxu0 0
      %973 = vmatprep.subr.bf16.mxu0 0
      %974 = vmatpush1.bf16.msra.mxu0 0
      %975 = vmatprep.subr.bf16.mxu0 0
      %976 = vmatpush1.bf16.msra.mxu0 %v956
      %977 = vmatprep.subr.bf16.mxu0 0
      %978 = vmatpush2.bf16.msra.mxu0 0
      %979 = vmatprep.subr.bf16.mxu0 0
      %980 = vmatpush2.bf16.msra.mxu0 0
      %981 = vmatprep.subr.bf16.mxu0 0
      %982 = vmatpush2.bf16.msra.mxu0 0
      %983 = vmatprep.subr.bf16.mxu0 0
      %984 = vmatpush2.bf16.msra.mxu0 0
      %985 = vmatprep.subr.bf16.mxu0 0
      %986 = vmatpush2.bf16.msra.mxu0 0
      %987 = vmatprep.subr.bf16.mxu0 0
      %988 = vmatpush2.bf16.msra.mxu0 0
      %989 = vmatprep.subr.bf16.mxu0 0
      %990 = vmatpush2.bf16.msra.mxu0 0
      %991 = vmatprep.subr.bf16.mxu0 0
      %992 = vmatpush2.bf16.msra.mxu0 0
      %993 = vmatprep.mubr.bf16.mxu0 0
      %994 = vmatmul.mubr.bf16.gmra.mxu0 %v959
      %v995 = vpop.f32.mrf.mxu0
      %v996 = vadd.f32 0.0, %v995
      %v997 = vpop.f32.mrf.mxu0
      %v998 = vpop.f32.mrf.mxu0
      %v999 = vadd.f32 0.0, %v998
      %v1000 = vpop.f32.mrf.mxu0
      %1001 = vdwg.mxu0
      %1004 = vrot.lane.b32.xlu0 %v996, 64
      %v1005 = vpop.permute.xlu0 %1004
      %1006 = vrot.lane.b32.xlu0 %v999, 64
      %v1007 = vpop.permute.xlu0 %1006
      %v1010 = vsel %vm762, %v872, %v1005
      %v1011 = vsel %vm762, %v875, %v1007
      %v1012 = vpack.c.bf16 %v1011, %v1010
      %v1013 = vld [vmem:[%s4] sm:$0xf]
      %v1014 = vld [vmem:[%s4 + $0x4] sm:$0xf]
      %v1015 = vld [vmem:[%s4 + $0x8] sm:$0xf]
      %v1016 = vld [vmem:[%s4 + $0xc] sm:$0xf]
      %v1017 = vld [vmem:[%s4 + $0x10] sm:$0xf]
      %v1018 = vld [vmem:[%s4 + $0x14] sm:$0xf]
      %v1019 = vld [vmem:[%s4 + $0x18] sm:$0xf]
      %v1020 = vld [vmem:[%s4 + $0x1c] sm:$0xf]
      %v1021 = vld [vmem:[%s4 + $0x20] sm:$0xf]
      %v1022 = vld [vmem:[%s4 + $0x24] sm:$0xf]
      %v1023 = vld [vmem:[%s4 + $0x28] sm:$0xf]
      %v1024 = vld [vmem:[%s4 + $0x2c] sm:$0xf]
      %v1025 = vld [vmem:[%s4 + $0x30] sm:$0xf]
      %v1026 = vld [vmem:[%s4 + $0x34] sm:$0xf]
      %v1027 = vld [vmem:[%s4 + $0x38] sm:$0xf]
      %v1028 = vld [vmem:[%s4 + $0x3c] sm:$0xf]
      %v1029 = vld [vmem:[%s5] sm:$0x1]
      %v1031 = vlaneseq
      %v1032 = vshrl.u32 %v1031, 7
      %v1033 = vsub.s32 0, %v1032
      %v1034 = vrot.slane %v1029, %v1033
      %v1052 = vunpack.c.l.b16 %v1013
      %v1053 = vunpack.c.l.b16 %v1014
      %v1054 = vunpack.c.l.b16 %v1015
      %v1055 = vunpack.c.l.b16 %v1016
      %v1056 = vunpack.c.l.b16 %v1017
      %v1057 = vunpack.c.l.b16 %v1018
      %v1058 = vunpack.c.l.b16 %v1019
      %v1059 = vunpack.c.l.b16 %v1020
      %v1060 = vunpack.c.l.b16 %v1021
      %v1061 = vunpack.c.l.b16 %v1022
      %v1062 = vunpack.c.l.b16 %v1023
      %v1063 = vunpack.c.l.b16 %v1024
      %v1064 = vunpack.c.l.b16 %v1025
      %v1065 = vunpack.c.l.b16 %v1026
      %v1066 = vunpack.c.l.b16 %v1027
      %v1067 = vunpack.c.l.b16 %v1028
      %v1068 = vpack.c.b16 %v1053, %v1052
      %v1069 = vpack.c.b16 %v1055, %v1054
      %v1070 = vpack.c.b16 %v1057, %v1056
      %v1071 = vpack.c.b16 %v1059, %v1058
      %v1072 = vpack.c.b16 %v1061, %v1060
      %v1073 = vpack.c.b16 %v1063, %v1062
      %v1074 = vpack.c.b16 %v1065, %v1064
      %v1075 = vpack.c.b16 %v1067, %v1066
      %1084 = vmatprep.subr.bf16.mxu0 0
      %1085 = vmatpush1.bf16.msra.mxu0 %v1075
      %1086 = vmatprep.subr.bf16.mxu0 0
      %1087 = vmatpush1.bf16.msra.mxu0 %v1074
      %1088 = vmatprep.subr.bf16.mxu0 0
      %1089 = vmatpush1.bf16.msra.mxu0 %v1073
      %1090 = vmatprep.subr.bf16.mxu0 0
      %1091 = vmatpush1.bf16.msra.mxu0 %v1072
      %1092 = vmatprep.subr.bf16.mxu0 0
      %1093 = vmatpush1.bf16.msra.mxu0 %v1071
      %1094 = vmatprep.subr.bf16.mxu0 0
      %1095 = vmatpush1.bf16.msra.mxu0 %v1070
      %1096 = vmatprep.subr.bf16.mxu0 0
      %1097 = vmatpush1.bf16.msra.mxu0 %v1069
      %1098 = vmatprep.subr.bf16.mxu0 0
      %1099 = vmatpush1.bf16.msra.mxu0 %v1068
      %1100 = vmatprep.subr.bf16.mxu0 0
      %1101 = vmatpush2.bf16.msra.mxu0 0
      %1102 = vmatprep.subr.bf16.mxu0 0
      %1103 = vmatpush2.bf16.msra.mxu0 0
      %1104 = vmatprep.subr.bf16.mxu0 0
      %1105 = vmatpush2.bf16.msra.mxu0 0
      %1106 = vmatprep.subr.bf16.mxu0 0
      %1107 = vmatpush2.bf16.msra.mxu0 0
      %1108 = vmatprep.subr.bf16.mxu0 0
      %1109 = vmatpush2.bf16.msra.mxu0 0
      %1110 = vmatprep.subr.bf16.mxu0 0
      %1111 = vmatpush2.bf16.msra.mxu0 0
      %1112 = vmatprep.subr.bf16.mxu0 0
      %1113 = vmatpush2.bf16.msra.mxu0 0
      %1114 = vmatprep.subr.bf16.mxu0 0
      %1115 = vmatpush2.bf16.msra.mxu0 0
      %1116 = vmatprep.mubr.bf16.mxu0 0
      %1117 = vmatmul.mubr.bf16.gmra.mxu0 %v1012
      %v1118 = vpop.f32.mrf.mxu0
      %v1119 = vadd.f32 %v1034, %v1118
      %v1120 = vpop.f32.mrf.mxu0
      %v1121 = vpop.f32.mrf.mxu0
      %v1122 = vadd.f32 %v1034, %v1121
      %v1123 = vpop.f32.mrf.mxu0
      %1124 = vdwg.mxu0
      %v1125 = vunpack.c.l.bf16 %v483
      %v1126 = vunpack.c.l.bf16 %v484
      %v1127 = vadd.f32 %v1119, %v1125
      %v1128 = vadd.f32 %v1122, %v1126
      %v1129 = vld [vmem:[%s6] sm:$0x1]
      %v1130 = vld [vmem:[%s7] sm:$0x1]
      %1131 = vadd.xlane.f32.xlu0 %v1127
      %v1132 = vpop.xlane.xlu0 %1131
      %1133 = vadd.xlane.f32.xlu0 %v1128
      %v1134 = vpop.xlane.xlu0 %1133
      %v1135 = vrcp.pop 128.0
      %v1136 = vmul.f32 %v1132, %v1135
      %v1137 = vmul.f32 %v1134, %v1135
      %v1138 = vsub.f32 %v1127, %v1136
      %v1139 = vsub.f32 %v1128, %v1137
      %v1140 = vmul.f32 %v1138, %v1138
      %v1141 = vmul.f32 %v1139, %v1139
      %1142 = vadd.xlane.f32.xlu0 %v1140
      %v1143 = vpop.xlane.xlu0 %1142
      %1144 = vadd.xlane.f32.xlu0 %v1141
      %v1145 = vpop.xlane.xlu0 %1144
      %v1146 = vmul.f32 %v1143, %v1135
      %v1147 = vmul.f32 %v1145, %v1135
      %v1148 = vadd.f32 %v1146, 1e-12
      %v1149 = vadd.f32 %v1147, 1e-12
      %v1150 = vrsqrt.pop %v1148
      %v1151 = vrsqrt.pop %v1149
      %v1152 = vmul.f32 %v1138, %v1150
      %v1153 = vmul.f32 %v1139, %v1151
      %v1155 = vlaneseq
      %v1156 = vshrl.u32 %v1155, 7
      %v1157 = vsub.s32 0, %v1156
      %v1158 = vrot.slane %v1129, %v1157
      %v1160 = vmul.f32 %v1152, %v1158
      %v1161 = vmul.f32 %v1153, %v1158
      %v1163 = vlaneseq
      %v1164 = vshrl.u32 %v1163, 7
      %v1165 = vsub.s32 0, %v1164
      %v1166 = vrot.slane %v1130, %v1165
      %v1168 = vadd.f32 %v1160, %v1166
      %v1169 = vadd.f32 %v1161, %v1166
      %v1170 = vpack.c.bf16 %v1169, %v1168
      %v1171 = vld [vmem:[%s8] sm:$0xff]
      %v1172 = vld [vmem:[%s8 + $0x8] sm:$0xff]
      %v1173 = vld [vmem:[%s8 + $0x10] sm:$0xff]
      %v1174 = vld [vmem:[%s8 + $0x18] sm:$0xff]
      %v1175 = vld [vmem:[%s8 + $0x20] sm:$0xff]
      %v1176 = vld [vmem:[%s8 + $0x28] sm:$0xff]
      %v1177 = vld [vmem:[%s8 + $0x30] sm:$0xff]
      %v1178 = vld [vmem:[%s8 + $0x38] sm:$0xff]
      %v1179 = vld [vmem:[%s8 + $0x40] sm:$0xff]
      %v1180 = vld [vmem:[%s8 + $0x48] sm:$0xff]
      %v1181 = vld [vmem:[%s8 + $0x50] sm:$0xff]
      %v1182 = vld [vmem:[%s8 + $0x58] sm:$0xff]
      %v1183 = vld [vmem:[%s8 + $0x60] sm:$0xff]
      %v1184 = vld [vmem:[%s8 + $0x68] sm:$0xff]
      %v1185 = vld [vmem:[%s8 + $0x70] sm:$0xff]
      %v1186 = vld [vmem:[%s8 + $0x78] sm:$0xff]
      %v1187 = vld [vmem:[%s9] sm:$0x3]
      %v1189 = vlaneseq
      %v1190 = vshrl.u32 %v1189, 7
      %v1191 = vsub.s32 0, %v1190
      %v1192 = vrot.slane %v1187, %v1191
      %v1193 = vlaneseq
      %v1194 = vshrl.u32 %v1193, 7
      %v1195 = vsub.s32 1, %v1194
      %v1196 = vrot.slane %v1187, %v1195
      %v1215 = vunpack.c.l.b16 %v1171
      %v1216 = vunpack.c.h.b16 %v1171
      %v1217 = vunpack.c.l.b16 %v1172
      %v1218 = vunpack.c.h.b16 %v1172
      %v1219 = vunpack.c.l.b16 %v1173
      %v1220 = vunpack.c.h.b16 %v1173
      %v1221 = vunpack.c.l.b16 %v1174
      %v1222 = vunpack.c.h.b16 %v1174
      %v1223 = vunpack.c.l.b16 %v1175
      %v1224 = vunpack.c.h.b16 %v1175
      %v1225 = vunpack.c.l.b16 %v1176
      %v1226 = vunpack.c.h.b16 %v1176
      %v1227 = vunpack.c.l.b16 %v1177
      %v1228 = vunpack.c.h.b16 %v1177
      %v1229 = vunpack.c.l.b16 %v1178
      %v1230 = vunpack.c.h.b16 %v1178
      %v1231 = vunpack.c.l.b16 %v1179
      %v1232 = vunpack.c.h.b16 %v1179
      %v1233 = vunpack.c.l.b16 %v1180
      %v1234 = vunpack.c.h.b16 %v1180
      %v1235 = vunpack.c.l.b16 %v1181
      %v1236 = vunpack.c.h.b16 %v1181
      %v1237 = vunpack.c.l.b16 %v1182
      %v1238 = vunpack.c.h.b16 %v1182
      %v1239 = vunpack.c.l.b16 %v1183
      %v1240 = vunpack.c.h.b16 %v1183
      %v1241 = vunpack.c.l.b16 %v1184
      %v1242 = vunpack.c.h.b16 %v1184
      %v1243 = vunpack.c.l.b16 %v1185
      %v1244 = vunpack.c.h.b16 %v1185
      %v1245 = vunpack.c.l.b16 %v1186
      %v1246 = vunpack.c.h.b16 %v1186
      %v1247 = vpack.c.b16 %v1217, %v1215
      %v1248 = vpack.c.b16 %v1218, %v1216
      %v1249 = vpack.c.b16 %v1221, %v1219
      %v1250 = vpack.c.b16 %v1222, %v1220
      %v1251 = vpack.c.b16 %v1225, %v1223
      %v1252 = vpack.c.b16 %v1226, %v1224
      %v1253 = vpack.c.b16 %v1229, %v1227
      %v1254 = vpack.c.b16 %v1230, %v1228
      %v1255 = vpack.c.b16 %v1233, %v1231
      %v1256 = vpack.c.b16 %v1234, %v1232
      %v1257 = vpack.c.b16 %v1237, %v1235
      %v1258 = vpack.c.b16 %v1238, %v1236
      %v1259 = vpack.c.b16 %v1241, %v1239
      %v1260 = vpack.c.b16 %v1242, %v1240
      %v1261 = vpack.c.b16 %v1245, %v1243
      %v1262 = vpack.c.b16 %v1246, %v1244
      %1279 = vmatprep.subr.bf16.mxu0 %v1262
      %1280 = vmatpush1.bf16.msra.mxu0 %v1261
      %1281 = vmatprep.subr.bf16.mxu0 %v1260
      %1282 = vmatpush1.bf16.msra.mxu0 %v1259
      %1283 = vmatprep.subr.bf16.mxu0 %v1258
      %1284 = vmatpush1.bf16.msra.mxu0 %v1257
      %1285 = vmatprep.subr.bf16.mxu0 %v1256
      %1286 = vmatpush1.bf16.msra.mxu0 %v1255
      %1287 = vmatprep.subr.bf16.mxu0 %v1254
      %1288 = vmatpush1.bf16.msra.mxu0 %v1253
      %1289 = vmatprep.subr.bf16.mxu0 %v1252
      %1290 = vmatpush1.bf16.msra.mxu0 %v1251
      %1291 = vmatprep.subr.bf16.mxu0 %v1250
      %1292 = vmatpush1.bf16.msra.mxu0 %v1249
      %1293 = vmatprep.subr.bf16.mxu0 %v1248
      %1294 = vmatpush1.bf16.msra.mxu0 %v1247
      %1295 = vmatprep.subr.bf16.mxu0 0
      %1296 = vmatpush2.bf16.msra.mxu0 0
      %1297 = vmatprep.subr.bf16.mxu0 0
      %1298 = vmatpush2.bf16.msra.mxu0 0
      %1299 = vmatprep.subr.bf16.mxu0 0
      %1300 = vmatpush2.bf16.msra.mxu0 0
      %1301 = vmatprep.subr.bf16.mxu0 0
      %1302 = vmatpush2.bf16.msra.mxu0 0
      %1303 = vmatprep.subr.bf16.mxu0 0
      %1304 = vmatpush2.bf16.msra.mxu0 0
      %1305 = vmatprep.subr.bf16.mxu0 0
      %1306 = vmatpush2.bf16.msra.mxu0 0
      %1307 = vmatprep.subr.bf16.mxu0 0
      %1308 = vmatpush2.bf16.msra.mxu0 0
      %1309 = vmatprep.subr.bf16.mxu0 0
      %1310 = vmatpush2.bf16.msra.mxu0 0
      %1311 = vmatprep.mubr.bf16.mxu0 0
      %1312 = vmatmul.mubr.bf16.gmra.mxu0 %v1170
      %v1313 = vpop.f32.mrf.mxu0
      %v1314 = vadd.f32 %v1192, %v1313
      %v1315 = vpop.f32.mrf.mxu0
      %v1316 = vadd.f32 %v1196, %v1315
      %v1317 = vpop.f32.mrf.mxu0
      %v1318 = vadd.f32 %v1192, %v1317
      %v1319 = vpop.f32.mrf.mxu0
      %v1320 = vadd.f32 %v1196, %v1319
      %1321 = vdwg.mxu0
      %v1322 = vmul.f32 %v1314, %v1314
      %v1323 = vmul.f32 %v1316, %v1316
      %v1324 = vmul.f32 %v1318, %v1318
      %v1325 = vmul.f32 %v1320, %v1320
      %v1326 = vmul.f32 %v1314, %v1322
      %v1327 = vmul.f32 %v1316, %v1323
      %v1328 = vmul.f32 %v1318, %v1324
      %v1329 = vmul.f32 %v1320, %v1325
      %v1330 = vmul.f32 %v1326, 0.044715
      %v1331 = vmul.f32 %v1327, 0.044715
      %v1332 = vmul.f32 %v1328, 0.044715
      %v1333 = vmul.f32 %v1329, 0.044715
      %v1334 = vadd.f32 %v1314, %v1330
      %v1335 = vadd.f32 %v1316, %v1331
      %v1336 = vadd.f32 %v1318, %v1332
      %v1337 = vadd.f32 %v1320, %v1333
      %v1338 = vmul.f32 %v1334, 0.7978846
      %v1339 = vmul.f32 %v1335, 0.7978846
      %v1340 = vmul.f32 %v1336, 0.7978846
      %v1341 = vmul.f32 %v1337, 0.7978846
      %v1342 = vtanh.pop %v1338
      %v1343 = vtanh.pop %v1339
      %v1344 = vtanh.pop %v1340
      %v1345 = vtanh.pop %v1341
      %v1346 = vadd.f32 %v1342, 1.0
      %v1347 = vadd.f32 %v1343, 1.0
      %v1348 = vadd.f32 %v1344, 1.0
      %v1349 = vadd.f32 %v1345, 1.0
      %v1350 = vmul.f32 %v1346, 0.5
      %v1351 = vmul.f32 %v1347, 0.5
      %v1352 = vmul.f32 %v1348, 0.5
      %v1353 = vmul.f32 %v1349, 0.5
      %v1354 = vmul.f32 %v1314, %v1350
      %v1355 = vmul.f32 %v1316, %v1351
      %v1356 = vmul.f32 %v1318, %v1352
      %v1357 = vmul.f32 %v1320, %v1353
      %v1358 = vpack.c.bf16 %v1356, %v1354
      %v1359 = vpack.c.bf16 %v1357, %v1355
      %v1360 = vld [vmem:[%s10] sm:$0xf]
      %v1361 = vld [vmem:[%s10 + $0x4] sm:$0xf]
      %v1362 = vld [vmem:[%s10 + $0x8] sm:$0xf]
      %v1363 = vld [vmem:[%s10 + $0xc] sm:$0xf]
      %v1364 = vld [vmem:[%s10 + $0x10] sm:$0xf]
      %v1365 = vld [vmem:[%s10 + $0x14] sm:$0xf]
      %v1366 = vld [vmem:[%s10 + $0x18] sm:$0xf]
      %v1367 = vld [vmem:[%s10 + $0x1c] sm:$0xf]
      %v1368 = vld [vmem:[%s10 + $0x20] sm:$0xf]
      %v1369 = vld [vmem:[%s10 + $0x24] sm:$0xf]
      %v1370 = vld [vmem:[%s10 + $0x28] sm:$0xf]
      %v1371 = vld [vmem:[%s10 + $0x2c] sm:$0xf]
      %v1372 = vld [vmem:[%s10 + $0x30] sm:$0xf]
      %v1373 = vld [vmem:[%s10 + $0x34] sm:$0xf]
      %v1374 = vld [vmem:[%s10 + $0x38] sm:$0xf]
      %v1375 = vld [vmem:[%s10 + $0x3c] sm:$0xf]
      %v1376 = vld [vmem:[%s10 + $0x40] sm:$0xf]
      %v1377 = vld [vmem:[%s10 + $0x44] sm:$0xf]
      %v1378 = vld [vmem:[%s10 + $0x48] sm:$0xf]
      %v1379 = vld [vmem:[%s10 + $0x4c] sm:$0xf]
      %v1380 = vld [vmem:[%s10 + $0x50] sm:$0xf]
      %v1381 = vld [vmem:[%s10 + $0x54] sm:$0xf]
      %v1382 = vld [vmem:[%s10 + $0x58] sm:$0xf]
      %v1383 = vld [vmem:[%s10 + $0x5c] sm:$0xf]
      %v1384 = vld [vmem:[%s10 + $0x60] sm:$0xf]
      %v1385 = vld [vmem:[%s10 + $0x64] sm:$0xf]
      %v1386 = vld [vmem:[%s10 + $0x68] sm:$0xf]
      %v1387 = vld [vmem:[%s10 + $0x6c] sm:$0xf]
      %v1388 = vld [vmem:[%s10 + $0x70] sm:$0xf]
      %v1389 = vld [vmem:[%s10 + $0x74] sm:$0xf]
      %v1390 = vld [vmem:[%s10 + $0x78] sm:$0xf]
      %v1391 = vld [vmem:[%s10 + $0x7c] sm:$0xf]
      %v1392 = vld [vmem:[%s11] sm:$0x1]
      %v1394 = vlaneseq
      %v1395 = vshrl.u32 %v1394, 7
      %v1396 = vsub.s32 0, %v1395
      %v1397 = vrot.slane %v1392, %v1396
      %v1431 = vunpack.c.l.b16 %v1360
      %v1432 = vunpack.c.l.b16 %v1361
      %v1433 = vunpack.c.l.b16 %v1362
      %v1434 = vunpack.c.l.b16 %v1363
      %v1435 = vunpack.c.l.b16 %v1364
      %v1436 = vunpack.c.l.b16 %v1365
      %v1437 = vunpack.c.l.b16 %v1366
      %v1438 = vunpack.c.l.b16 %v1367
      %v1439 = vunpack.c.l.b16 %v1368
      %v1440 = vunpack.c.l.b16 %v1369
      %v1441 = vunpack.c.l.b16 %v1370
      %v1442 = vunpack.c.l.b16 %v1371
      %v1443 = vunpack.c.l.b16 %v1372
      %v1444 = vunpack.c.l.b16 %v1373
      %v1445 = vunpack.c.l.b16 %v1374
      %v1446 = vunpack.c.l.b16 %v1375
      %v1447 = vunpack.c.l.b16 %v1376
      %v1448 = vunpack.c.l.b16 %v1377
      %v1449 = vunpack.c.l.b16 %v1378
      %v1450 = vunpack.c.l.b16 %v1379
      %v1451 = vunpack.c.l.b16 %v1380
      %v1452 = vunpack.c.l.b16 %v1381
      %v1453 = vunpack.c.l.b16 %v1382
      %v1454 = vunpack.c.l.b16 %v1383
      %v1455 = vunpack.c.l.b16 %v1384
      %v1456 = vunpack.c.l.b16 %v1385
      %v1457 = vunpack.c.l.b16 %v1386
      %v1458 = vunpack.c.l.b16 %v1387
      %v1459 = vunpack.c.l.b16 %v1388
      %v1460 = vunpack.c.l.b16 %v1389
      %v1461 = vunpack.c.l.b16 %v1390
      %v1462 = vunpack.c.l.b16 %v1391
      %v1463 = vpack.c.b16 %v1432, %v1431
      %v1464 = vpack.c.b16 %v1434, %v1433
      %v1465 = vpack.c.b16 %v1436, %v1435
      %v1466 = vpack.c.b16 %v1438, %v1437
      %v1467 = vpack.c.b16 %v1440, %v1439
      %v1468 = vpack.c.b16 %v1442, %v1441
      %v1469 = vpack.c.b16 %v1444, %v1443
      %v1470 = vpack.c.b16 %v1446, %v1445
      %v1471 = vpack.c.b16 %v1448, %v1447
      %v1472 = vpack.c.b16 %v1450, %v1449
      %v1473 = vpack.c.b16 %v1452, %v1451
      %v1474 = vpack.c.b16 %v1454, %v1453
      %v1475 = vpack.c.b16 %v1456, %v1455
      %v1476 = vpack.c.b16 %v1458, %v1457
      %v1477 = vpack.c.b16 %v1460, %v1459
      %v1478 = vpack.c.b16 %v1462, %v1461
      %1495 = vmatprep.subr.bf16.mxu0 0
      %1496 = vmatpush1.bf16.msra.mxu0 %v1470
      %1497 = vmatprep.subr.bf16.mxu0 0
      %1498 = vmatpush1.bf16.msra.mxu0 %v1469
      %1499 = vmatprep.subr.bf16.mxu0 0
      %1500 = vmatpush1.bf16.msra.mxu0 %v1468
      %1501 = vmatprep.subr.bf16.mxu0 0
      %1502 = vmatpush1.bf16.msra.mxu0 %v1467
      %1503 = vmatprep.subr.bf16.mxu0 0
      %1504 = vmatpush1.bf16.msra.mxu0 %v1466
      %1505 = vmatprep.subr.bf16.mxu0 0
      %1506 = vmatpush1.bf16.msra.mxu0 %v1465
      %1507 = vmatprep.subr.bf16.mxu0 0
      %1508 = vmatpush1.bf16.msra.mxu0 %v1464
      %1509 = vmatprep.subr.bf16.mxu0 0
      %1510 = vmatpush1.bf16.msra.mxu0 %v1463
      %1511 = vmatprep.subr.bf16.mxu0 0
      %1512 = vmatpush2.bf16.msra.mxu0 %v1478
      %1513 = vmatprep.subr.bf16.mxu0 0
      %1514 = vmatpush2.bf16.msra.mxu0 %v1477
      %1515 = vmatprep.subr.bf16.mxu0 0
      %1516 = vmatpush2.bf16.msra.mxu0 %v1476
      %1517 = vmatprep.subr.bf16.mxu0 0
      %1518 = vmatpush2.bf16.msra.mxu0 %v1475
      %1519 = vmatprep.subr.bf16.mxu0 0
      %1520 = vmatpush2.bf16.msra.mxu0 %v1474
      %1521 = vmatprep.subr.bf16.mxu0 0
      %1522 = vmatpush2.bf16.msra.mxu0 %v1473
      %1523 = vmatprep.subr.bf16.mxu0 0
      %1524 = vmatpush2.bf16.msra.mxu0 %v1472
      %1525 = vmatprep.subr.bf16.mxu0 0
      %1526 = vmatpush2.bf16.msra.mxu0 %v1471
      %1527 = vmatprep.mubr.bf16.mxu0 %v1359
      %1528 = vmatmul.mubr.bf16.gmra.mxu0 %v1358
      %v1529 = vpop.f32.mrf.mxu0
      %v1530 = vadd.f32 %v1397, %v1529
      %v1531 = vpop.f32.mrf.mxu0
      %v1532 = vpop.f32.mrf.mxu0
      %v1533 = vadd.f32 %v1397, %v1532
      %v1534 = vpop.f32.mrf.mxu0
      %1535 = vdwg.mxu0
      %v1536 = vunpack.c.l.bf16 %v1170
      %v1537 = vunpack.c.h.bf16 %v1170
      %v1538 = vadd.f32 %v1530, %v1536
      %v1539 = vadd.f32 %v1533, %v1537
      %v1540 = vld [vmem:[%s12] sm:$0x1]
      %v1541 = vld [vmem:[%s13] sm:$0x1]
      %1542 = vadd.xlane.f32.xlu0 %v1538
      %v1543 = vpop.xlane.xlu0 %1542
      %1544 = vadd.xlane.f32.xlu0 %v1539
      %v1545 = vpop.xlane.xlu0 %1544
      %v1546 = vmul.f32 %v1543, %v1135
      %v1547 = vmul.f32 %v1545, %v1135
      %v1548 = vsub.f32 %v1538, %v1546
      %v1549 = vsub.f32 %v1539, %v1547
      %v1550 = vmul.f32 %v1548, %v1548
      %v1551 = vmul.f32 %v1549, %v1549
      %1552 = vadd.xlane.f32.xlu0 %v1550
      %v1553 = vpop.xlane.xlu0 %1552
      %1554 = vadd.xlane.f32.xlu0 %v1551
      %v1555 = vpop.xlane.xlu0 %1554
      %v1556 = vmul.f32 %v1553, %v1135
      %v1557 = vmul.f32 %v1555, %v1135
      %v1558 = vadd.f32 %v1556, 1e-12
      %v1559 = vadd.f32 %v1557, 1e-12
      %v1560 = vrsqrt.pop %v1558
      %v1561 = vrsqrt.pop %v1559
      %v1562 = vmul.f32 %v1548, %v1560
      %v1563 = vmul.f32 %v1549, %v1561
      %v1565 = vlaneseq
      %v1566 = vshrl.u32 %v1565, 7
      %v1567 = vsub.s32 0, %v1566
      %v1568 = vrot.slane %v1540, %v1567
      %v1570 = vmul.f32 %v1562, %v1568
      %v1571 = vmul.f32 %v1563, %v1568
      %v1573 = vlaneseq
      %v1574 = vshrl.u32 %v1573, 7
      %v1575 = vsub.s32 0, %v1574
      %v1576 = vrot.slane %v1541, %v1575
      %v1578 = vadd.f32 %v1570, %v1576
      %v1579 = vadd.f32 %v1571, %v1576
      %v1580 = vpack.c.bf16 %v1579, %v1578
      %v1582 = vunpack.c.l.b16 %v1580
      %v1583 = vunpack.c.h.b16 %v1580
      %v1584 = vpack.c.b16 %v1582, %v1582
      %v1585 = vpack.c.b16 %v1583, %v1583
      %1588 = vst [vmem:[%s481] sm:$0xf] %v1584
      %1589 = vst [vmem:[%s481 + $0x4] sm:$0xf] %v1585
      %p1590 = scmp.lt.s32.totalorder %s25, 5
      %s1591 = scalar_select %p1590, %s25, 5
      %s1592 = smul.addr %s1591, 2
      %s1593 = smul.addr %s1592, 4
      %s1594 = scalar_lea.vmem %s14, %s1593
      // Predicated region
      $region77: #{bert_parts_forward.6} parent=75 // pred_check
        %p1595 = pneg %p347
      $region78: #{bert_parts_forward.6} parent=75 // pred_check_branch
        %1597 = sbr.rel (%p1595) target = $region80
      $region79: #{bert_parts_forward.6} parent=75 // pred_region
        _
      $region80: #{bert_parts_forward.6} parent=75 // pred_fallthru
        _
    $region76: #{bert_parts_forward.6} parent=5 // pred_fallthru
      _
    %p1598 = scmp.le.s32.totalorder 2, %s20
    // Predicated region
    $region81: #{bert_parts_forward.6} parent=5 // pred_check
      %p1599 = pneg %p1598
    $region82: #{bert_parts_forward.6} parent=5 // pred_check_branch
      %1601 = sbr.rel (%p1599) target = $region84
    $region83: #{bert_parts_forward.6} parent=5 // pred_region
      %s1602 = ssub.s32 %s20, 2
      // Predicated region
      $region85: #{bert_parts_forward.6} parent=83 // pred_check
        %p1603 = pneg %p353
      $region86: #{bert_parts_forward.6} parent=83 // pred_check_branch
        %1605 = sbr.rel (%p1603) target = $region88
      $region87: #{bert_parts_forward.6} parent=83 // pred_region
        %p1606 = scmp.lt.s32.totalorder %s26, 5
        %s1607 = scalar_select %p1606, %s26, 5
        %s1608 = smul.addr %s1607, 2
        %s1609 = smul.addr %s1608, 4
        %s1610 = scalar_lea.vmem %s14, %s1609
      $region88: #{bert_parts_forward.6} parent=83 // pred_fallthru
        _
    $region84: #{bert_parts_forward.6} parent=5 // pred_fallthru
      _
  $region6: #{bert_parts_forward.6} parent=0 // loop_footer
    %s24 = sadd.s32 1, %s20
  $region7: #{bert_parts_forward.6} parent=0 // loop_footer_branch
    %19 = sbr.rel target = $region3
  $region8: #{bert_parts_forward.6} parent=0 // loop_exit
    _

</llo_original>
